<compile_context>
chip_gen: v7x
topology: tpu7x:2x2x1
jax: 0.10.0
libtpu: 0.0.40
codegen_flags: <defaults>
</compile_context>

<pallas_src>
import jax
import jax.numpy as jnp
import numpy as np
from jax.experimental import pallas as pl
from jax.experimental.pallas import tpu as pltpu


def _action_head_kernel(x_ref, w1_ref, w2_ref, b_ref, o_ref):
    # x_ref: (rb, D)   w1_ref: (D, F)   w2_ref: (F, F)   b_ref: (2, F) f32
    # o_ref: (rb, F)
    x = x_ref[...]

    # linear1 + ReLU  (MXU matmul, f32 accumulation, f32 bias add)
    h = jnp.dot(x, w1_ref[...], preferred_element_type=jnp.float32)
    h = jnp.maximum(h + b_ref[0:1, :], 0.0)

    # linear2 + ReLU
    y = jnp.dot(h.astype(w2_ref.dtype), w2_ref[...],
                preferred_element_type=jnp.float32)
    y = jnp.maximum(y + b_ref[1:2, :], 0.0)

    o_ref[...] = y.astype(o_ref.dtype)


def _round_up(n, m):
    return ((n + m - 1) // m) * m


def _pallas_forward(x2d, w1, w2, b_pack, rb, single_buffer_weights):
    N, D = x2d.shape
    F = w1.shape[1]
    grid = (pl.cdiv(N, rb),)  # boundary block masked by Pallas; no padding

    def resident_spec(shape):
        # Constant index_map: DMA'd once, resident in VMEM across the grid.
        if single_buffer_weights:
            return pl.BlockSpec(shape, lambda i: (0, 0),
                                pipeline_mode=pl.Buffered(1))
        return pl.BlockSpec(shape, lambda i: (0, 0))

    return pl.pallas_call(
        _action_head_kernel,
        out_shape=jax.ShapeDtypeStruct((N, F), jnp.float32),
        grid=grid,
        in_specs=[
            pl.BlockSpec((rb, D), lambda i: (i, 0)),   # streamed x row tile
            resident_spec((D, F)),                     # W1 (resident)
            resident_spec((F, F)),                     # W2 (resident)
            resident_spec((2, F)),                     # packed (b1; b2)
        ],
        out_specs=pl.BlockSpec((rb, F), lambda i: (i, 0)),
        compiler_params=pltpu.CompilerParams(
            dimension_semantics=("parallel",)),
    )(x2d, w1, w2, b_pack)


def _reference(x, w1, b1, w2, b2):
    """Pure-JAX reference of the PyTorch forward (also the tiny-batch path)."""
    N = x.shape[0]
    x2d = x.reshape(N, -1).astype(jnp.float32)
    h = jnp.maximum(x2d @ w1.astype(jnp.float32) + b1, 0.0)
    return jnp.maximum(h @ w2.astype(jnp.float32) + b2, 0.0)


def action_input_head_pallas(x, w1, b1, w2, b2, *, row_block=256,
                             use_bf16=False, min_rows_for_pallas=128,
                             force_pallas=False):
    """x: (N, T, W, H).
    w1: (D, F), w2: (F, F) -- PyTorch nn.Linear weights stored transposed
    (i.e. W.T) so the kernel computes x @ W.T + b directly.
    b1, b2: (1, F).  Returns (N, F) float32."""
    N = x.shape[0]
    D = int(np.prod(x.shape[1:]))
    x2d = x.reshape(N, D).astype(jnp.float32)

    # Tiny batches: launch + DMA-prime overhead dwarfs ~1 MFLOP of work and
    # XLA fuses the two GEMMs for free -> use the plain-JAX path.
    if N < min_rows_for_pallas and not force_pallas:
        return _reference(x, w1, b1, w2, b2)

    if use_bf16:
        # Halve the dominant HBM stream; accumulation stays f32 in-kernel.
        x2d = x2d.astype(jnp.bfloat16)
        w1 = w1.astype(jnp.bfloat16)
        w2 = w2.astype(jnp.bfloat16)

    # Pack the two tiny bias vectors into one (2, F) operand: one resident
    # DMA instead of two.  Bias add stays f32.
    b_pack = jnp.concatenate([b1, b2], axis=0).astype(jnp.float32)

    # Fixed row tile (multiple of 8 sublanes), clamped for tiny batches.
    rb = max(8, min(row_block, _round_up(N, 8)))

    try:
        return _pallas_forward(x2d, w1, w2, b_pack, rb,
                               single_buffer_weights=True)
    except Exception:
        # Fallback if pl.Buffered(1) is rejected by this jax/libtpu build.
        return _pallas_forward(x2d, w1, w2, b_pack, rb,
                               single_buffer_weights=False)


def make_params(key, D, F):
    """Deterministic synthetic parameters matching ActionInputHead shapes.
    PyTorch Linear weights are (out, in); stored here transposed as (in, out)."""
    ks = jax.random.split(key, 4)
    w1 = jax.random.normal(ks[0], (D, F), jnp.float32) * (1.0 / np.sqrt(D))
    b1 = jax.random.normal(ks[1], (1, F), jnp.float32) * 0.1
    w2 = jax.random.normal(ks[2], (F, F), jnp.float32) * (1.0 / np.sqrt(F))
    b2 = jax.random.normal(ks[3], (1, F), jnp.float32) * 0.1
    return w1, b1, w2, b2


if __name__ == "__main__":
    key = jax.random.PRNGKey(0)
    kx, kp, kx2 = jax.random.split(key, 3)

    # ActionInputHead(action_shape=(4, 16, 16), out_features=128)
    # input (N, T, W, H) = (2, 4, 16, 16) -> D = 1024 flattened features.
    N, T, W, H = 2, 4, 16, 16
    D = T * W * H
    F = 128  # out_features, lane-dense (multiple of 128)

    x = jax.random.normal(kx, (N, T, W, H), jnp.float32)
    w1, b1, w2, b2 = make_params(kp, D, F)
    ref = _reference(x, w1, b1, w2, b2)

    # 1) f32 Pallas path (forced: demo batch is below the tiny-batch cutoff).
    out = action_input_head_pallas(x, w1, b1, w2, b2, force_pallas=True)
    out = jax.block_until_ready(out)
    assert out.shape == (N, F), out.shape
    assert jnp.allclose(out, ref, atol=1e-3, rtol=1e-3), "f32 kernel mismatch"

    # 2) bf16-input path (f32 accumulation) on the same demo batch.
    out_bf16 = action_input_head_pallas(x, w1, b1, w2, b2,
                                        force_pallas=True, use_bf16=True)
    out_bf16 = jax.block_until_ready(out_bf16)
    assert out_bf16.shape == (N, F), out_bf16.shape
    assert jnp.allclose(out_bf16, ref, atol=8e-2, rtol=5e-2), "bf16 mismatch"

    # 3) non-multiple-of-tile batch: exercises the masked boundary block and a
    #    multi-step "parallel" grid (no padding / output slicing involved).
    N2 = 300
    xb = jax.random.normal(kx2, (N2, T, W, H), jnp.float32)
    refb = _reference(xb, w1, b1, w2, b2)
    outb = action_input_head_pallas(xb, w1, b1, w2, b2)
    outb = jax.block_until_ready(outb)
    assert outb.shape == (N2, F), outb.shape
    assert jnp.allclose(outb, refb, atol=1e-3, rtol=1e-3), "boundary mismatch"

    print("KERNEL_OK")
</pallas_src>

<mosaic_0001>
module attributes {stable_mosaic.version = 11 : i64} {
  func.func @_action_head_kernel(%arg0: i32, %arg1: memref<8x1024xf32, #tpu.memory_space<vmem>>, %arg2: memref<1024x128xf32, #tpu.memory_space<vmem>>, %arg3: memref<128x128xf32, #tpu.memory_space<vmem>>, %arg4: memref<2x128xf32, #tpu.memory_space<vmem>>, %arg5: memref<8x128xf32, #tpu.memory_space<vmem>>) attributes {dimension_semantics = [#tpu.dimension_semantics<parallel>], iteration_bounds = array<i64: 1>, scalar_prefetch = 0 : i64, scratch_operands = 0 : i64, tpu.core_type = #tpu.core_type<tc>, window_params = [{transform_indices = @transform_0, window_bounds = array<i64: 8, 1024>}, {pipeline_mode = #tpu.pipeline_mode<synchronous>, transform_indices = @transform_1, window_bounds = array<i64: 1024, 128>}, {pipeline_mode = #tpu.pipeline_mode<synchronous>, transform_indices = @transform_2, window_bounds = array<i64: 128, 128>}, {pipeline_mode = #tpu.pipeline_mode<synchronous>, transform_indices = @transform_3, window_bounds = array<i64: 2, 128>}, {transform_indices = @transform_4, window_bounds = array<i64: 8, 128>}]} {
    %c0 = arith.constant 0 : index
    %c0_0 = arith.constant 0 : index
    %0 = vector.load %arg1[%c0, %c0_0] : memref<8x1024xf32, #tpu.memory_space<vmem>>, vector<8x1024xf32>
    %c0_1 = arith.constant 0 : index
    %c0_2 = arith.constant 0 : index
    %1 = vector.load %arg2[%c0_1, %c0_2] : memref<1024x128xf32, #tpu.memory_space<vmem>>, vector<1024x128xf32>
    %cst = arith.constant dense<0.000000e+00> : vector<8x128xf32>
    %2 = tpu.matmul %0, %1, %cst {dimension_numbers = #tpu.dot_dimension_numbers<[1], [0], [0], [1], [0, 0, 1, 1], [], []>} : vector<8x1024xf32>, vector<1024x128xf32>, vector<8x128xf32> -> vector<8x128xf32>
    %c0_3 = arith.constant 0 : index
    %c0_4 = arith.constant 0 : index
    %3 = vector.load %arg4[%c0_3, %c0_4] : memref<2x128xf32, #tpu.memory_space<vmem>>, vector<1x128xf32>
    %4 = vector.broadcast %3 : vector<1x128xf32> to vector<8x128xf32>
    %5 = arith.addf %2, %4 : vector<8x128xf32>
    %cst_5 = arith.constant 0.000000e+00 : f32
    %6 = vector.broadcast %cst_5 : f32 to vector<8x128xf32>
    %7 = arith.maximumf %5, %6 : vector<8x128xf32>
    %c0_6 = arith.constant 0 : index
    %c0_7 = arith.constant 0 : index
    %8 = vector.load %arg3[%c0_6, %c0_7] : memref<128x128xf32, #tpu.memory_space<vmem>>, vector<128x128xf32>
    %cst_8 = arith.constant dense<0.000000e+00> : vector<8x128xf32>
    %9 = tpu.matmul %7, %8, %cst_8 {dimension_numbers = #tpu.dot_dimension_numbers<[1], [0], [0], [1], [0, 0, 1, 1], [], []>} : vector<8x128xf32>, vector<128x128xf32>, vector<8x128xf32> -> vector<8x128xf32>
    %c1 = arith.constant 1 : index
    %c0_9 = arith.constant 0 : index
    %10 = vector.load %arg4[%c1, %c0_9] : memref<2x128xf32, #tpu.memory_space<vmem>>, vector<1x128xf32>
    %11 = vector.broadcast %10 : vector<1x128xf32> to vector<8x128xf32>
    %12 = arith.addf %9, %11 : vector<8x128xf32>
    %cst_10 = arith.constant 0.000000e+00 : f32
    %13 = vector.broadcast %cst_10 : f32 to vector<8x128xf32>
    %14 = arith.maximumf %12, %13 : vector<8x128xf32>
    %c0_11 = arith.constant 0 : index
    %c0_12 = arith.constant 0 : index
    %15 = vector.load %arg5[%c0_11, %c0_12] : memref<8x128xf32, #tpu.memory_space<vmem>>, vector<8x128xf32>
    tpu.vector_store %arg5[%c0_11, %c0_12], %14 {strides = array<i32>} : memref<8x128xf32, #tpu.memory_space<vmem>>, vector<8x128xf32>,
    return
  }
  func.func @transform_0(%arg0: i32) -> (i32, i32) {
    %c0_i32 = arith.constant 0 : i32
    %c0_i32_0 = arith.constant 0 : i32
    return %arg0, %c0_i32 : i32, i32
  }
  func.func @transform_1(%arg0: i32) -> (i32, i32) {
    %c0_i32 = arith.constant 0 : i32
    %c0_i32_0 = arith.constant 0 : i32
    %c0_i32_1 = arith.constant 0 : i32
    return %c0_i32, %c0_i32_0 : i32, i32
  }
  func.func @transform_2(%arg0: i32) -> (i32, i32) {
    %c0_i32 = arith.constant 0 : i32
    %c0_i32_0 = arith.constant 0 : i32
    %c0_i32_1 = arith.constant 0 : i32
    return %c0_i32, %c0_i32_0 : i32, i32
  }
  func.func @transform_3(%arg0: i32) -> (i32, i32) {
    %c0_i32 = arith.constant 0 : i32
    %c0_i32_0 = arith.constant 0 : i32
    %c0_i32_1 = arith.constant 0 : i32
    return %c0_i32, %c0_i32_0 : i32, i32
  }
  func.func @transform_4(%arg0: i32) -> (i32, i32) {
    %c0_i32 = arith.constant 0 : i32
    %c0_i32_0 = arith.constant 0 : i32
    return %arg0, %c0_i32 : i32, i32
  }
}

module attributes {stable_mosaic.version = 11 : i64} {
  func.func @_action_head_kernel(%arg0: i32, %arg1: memref<8x1024xf32, #tpu.memory_space<vmem>>, %arg2: memref<1024x128xf32, #tpu.memory_space<vmem>>, %arg3: memref<128x128xf32, #tpu.memory_space<vmem>>, %arg4: memref<2x128xf32, #tpu.memory_space<vmem>>, %arg5: memref<8x128xf32, #tpu.memory_space<vmem>>) attributes {dimension_semantics = [#tpu.dimension_semantics<parallel>], iteration_bounds = array<i64: 1>, scalar_prefetch = 0 : i64, scratch_operands = 0 : i64, tpu.core_type = #tpu.core_type<tc>, window_params = [{transform_indices = @transform_0, window_bounds = array<i64: 8, 1024>}, {pipeline_mode = #tpu.pipeline_mode<synchronous>, transform_indices = @transform_1, window_bounds = array<i64: 1024, 128>}, {pipeline_mode = #tpu.pipeline_mode<synchronous>, transform_indices = @transform_2, window_bounds = array<i64: 128, 128>}, {pipeline_mode = #tpu.pipeline_mode<synchronous>, transform_indices = @transform_3, window_bounds = array<i64: 2, 128>}, {transform_indices = @transform_4, window_bounds = array<i64: 8, 128>}]} {
    %c0 = arith.constant 0 : index
    %c0_0 = arith.constant 0 : index
    %0 = vector.load %arg1[%c0, %c0_0] : memref<8x1024xf32, #tpu.memory_space<vmem>>, vector<8x1024xf32>
    %c0_1 = arith.constant 0 : index
    %c0_2 = arith.constant 0 : index
    %1 = vector.load %arg2[%c0_1, %c0_2] : memref<1024x128xf32, #tpu.memory_space<vmem>>, vector<1024x128xf32>
    %cst = arith.constant dense<0.000000e+00> : vector<8x128xf32>
    %2 = tpu.matmul %0, %1, %cst {dimension_numbers = #tpu.dot_dimension_numbers<[1], [0], [0], [1], [0, 0, 1, 1], [], []>} : vector<8x1024xf32>, vector<1024x128xf32>, vector<8x128xf32> -> vector<8x128xf32>
    %c0_3 = arith.constant 0 : index
    %c0_4 = arith.constant 0 : index
    %3 = vector.load %arg4[%c0_3, %c0_4] : memref<2x128xf32, #tpu.memory_space<vmem>>, vector<1x128xf32>
    %4 = vector.broadcast %3 : vector<1x128xf32> to vector<8x128xf32>
    %5 = arith.addf %2, %4 : vector<8x128xf32>
    %cst_5 = arith.constant 0.000000e+00 : f32
    %6 = vector.broadcast %cst_5 : f32 to vector<8x128xf32>
    %7 = arith.maximumf %5, %6 : vector<8x128xf32>
    %c0_6 = arith.constant 0 : index
    %c0_7 = arith.constant 0 : index
    %8 = vector.load %arg3[%c0_6, %c0_7] : memref<128x128xf32, #tpu.memory_space<vmem>>, vector<128x128xf32>
    %cst_8 = arith.constant dense<0.000000e+00> : vector<8x128xf32>
    %9 = tpu.matmul %7, %8, %cst_8 {dimension_numbers = #tpu.dot_dimension_numbers<[1], [0], [0], [1], [0, 0, 1, 1], [], []>} : vector<8x128xf32>, vector<128x128xf32>, vector<8x128xf32> -> vector<8x128xf32>
    %c1 = arith.constant 1 : index
    %c0_9 = arith.constant 0 : index
    %10 = vector.load %arg4[%c1, %c0_9] : memref<2x128xf32, #tpu.memory_space<vmem>>, vector<1x128xf32>
    %11 = vector.broadcast %10 : vector<1x128xf32> to vector<8x128xf32>
    %12 = arith.addf %9, %11 : vector<8x128xf32>
    %cst_10 = arith.constant 0.000000e+00 : f32
    %13 = vector.broadcast %cst_10 : f32 to vector<8x128xf32>
    %14 = arith.maximumf %12, %13 : vector<8x128xf32>
    %c0_11 = arith.constant 0 : index
    %c0_12 = arith.constant 0 : index
    %15 = vector.load %arg5[%c0_11, %c0_12] : memref<8x128xf32, #tpu.memory_space<vmem>>, vector<8x128xf32>
    tpu.vector_store %arg5[%c0_11, %c0_12], %14 {strides = array<i32>} : memref<8x128xf32, #tpu.memory_space<vmem>>, vector<8x128xf32>,
    return
  }
  func.func @transform_0(%arg0: i32) -> (i32, i32) {
    %c0_i32 = arith.constant 0 : i32
    %c0_i32_0 = arith.constant 0 : i32
    return %arg0, %c0_i32 : i32, i32
  }
  func.func @transform_1(%arg0: i32) -> (i32, i32) {
    %c0_i32 = arith.constant 0 : i32
    %c0_i32_0 = arith.constant 0 : i32
    %c0_i32_1 = arith.constant 0 : i32
    return %c0_i32, %c0_i32_0 : i32, i32
  }
  func.func @transform_2(%arg0: i32) -> (i32, i32) {
    %c0_i32 = arith.constant 0 : i32
    %c0_i32_0 = arith.constant 0 : i32
    %c0_i32_1 = arith.constant 0 : i32
    return %c0_i32, %c0_i32_0 : i32, i32
  }
  func.func @transform_3(%arg0: i32) -> (i32, i32) {
    %c0_i32 = arith.constant 0 : i32
    %c0_i32_0 = arith.constant 0 : i32
    %c0_i32_1 = arith.constant 0 : i32
    return %c0_i32, %c0_i32_0 : i32, i32
  }
  func.func @transform_4(%arg0: i32) -> (i32, i32) {
    %c0_i32 = arith.constant 0 : i32
    %c0_i32_0 = arith.constant 0 : i32
    return %arg0, %c0_i32 : i32, i32
  }
}

</mosaic_0001>

<llo_original>
// kernel: tpu_custom_call.1
$region0: #{tpu_custom_call.1}
  #allocation0 [shape = 'u32[]', space=smem, size = 0x4, offset = 0x4, fixed_abs, tag = 'smem constant byte address 0x4 - core index']
  #allocation1 [shape = 'u32[144,128]{1,0:T(1,128)}', space=vmem, size = 0x12000, scoped, tag = 'internal scratch']
  %s0 = inlined_call_operand.hbm [shape: f32[2,1024], index: 0, kind: input, shape index: {}]
  %s1 = inlined_call_operand.hbm [shape: f32[1024,128], index: 1, kind: input, shape index: {}]
  %s2 = inlined_call_operand.hbm [shape: f32[128,128], index: 2, kind: input, shape index: {}]
  %s3 = inlined_call_operand.vmem [shape: f32[2,128], index: 3, kind: input, shape index: {}]
  %s4 = inlined_call_operand.hbm [shape: f32[2,128], index: 4, kind: output, shape index: {}]
  %s5 = sld [smem:[#allocation0]]
  $region38: #{tpu_custom_call.1} parent=0
    _
  %s7 = ssub.s32 1, %s5
  %s8 = scalar_select 0, %s7, %s5
  $region1: #{tpu_custom_call.1} parent=0
    #allocation2 [shape = 'u8[32768]{0}', space=vmem, size = 0x8000, scoped, tag = 'input window, operand 0, single buffered']
    #allocation3 [shape = 's32[1]{0}', space=sflag, size = 0x4, scoped, tag = 'scoped memory for tpu_custom_call.1']
    #allocation4 [shape = 's32[1]{0}', space=sflag, size = 0x4, scoped, tag = 'scoped memory for tpu_custom_call.1']
    #allocation5 [shape = 'u8[524288]{0}', space=vmem, size = 0x80000, scoped, tag = 'input window, operand 1, single buffered']
    #allocation6 [shape = 's32[1]{0}', space=sflag, size = 0x4, scoped, tag = 'scoped memory for tpu_custom_call.1']
    #allocation7 [shape = 'u8[65536]{0}', space=vmem, size = 0x10000, scoped, tag = 'input window, operand 2, single buffered']
    #allocation8 [shape = 'u8[4096]{0}', space=vmem, size = 0x1000, scoped, tag = 'output window, operand 0, single buffered']
    %9 = vsyncpa [#allocation3], 0
    %10 = vsyncpa [#allocation6], 0
    %11 = vsyncpa [#allocation4], 0
    // Predicated region
    $region2: #{tpu_custom_call.1} parent=1 // pred_check
      _
    $region3: #{tpu_custom_call.1} parent=1 // pred_check_branch
      %13 = sbr.rel (0) target = $region5
    $region4: #{tpu_custom_call.1} parent=1 // pred_region
      %s15 = ssub.s32 1024, 256
      %16 = vsyncadd [#allocation3], %s15
      %s17 = sshll.u32 [#allocation2], 4
      %s18 = int_to_ptr.vmem [resolvable:$true] %s17
      %23 = dma.hbm_to_vmem [thread:$0]  %s0, 256, %s18, [#allocation3], 256, 256, 16
    $region5: #{tpu_custom_call.1} parent=1 // pred_fallthru
      _
    // Predicated region
    $region6: #{tpu_custom_call.1} parent=1 // pred_check
      _
    $region7: #{tpu_custom_call.1} parent=1 // pred_check_branch
      %25 = sbr.rel (0) target = $region9
    $region8: #{tpu_custom_call.1} parent=1 // pred_region
      %s27 = ssub.s32 16384, 16384
      %28 = vsyncadd [#allocation6], %s27
      %s29 = sshll.u32 [#allocation5], 4
      %s30 = int_to_ptr.vmem [resolvable:$true] %s29
      %35 = dma.hbm_to_vmem [thread:$0]  %s1, 16384, %s30, [#allocation6], 128, 128, 8
    $region9: #{tpu_custom_call.1} parent=1 // pred_fallthru
      _
    // Predicated region
    $region10: #{tpu_custom_call.1} parent=1 // pred_check
      _
    $region11: #{tpu_custom_call.1} parent=1 // pred_check_branch
      %37 = sbr.rel (0) target = $region13
    $region12: #{tpu_custom_call.1} parent=1 // pred_region
      %s39 = ssub.s32 2048, 2048
      %40 = vsyncadd [#allocation6], %s39
      %s41 = sshll.u32 [#allocation7], 4
      %s42 = int_to_ptr.vmem [resolvable:$true] %s41
      %47 = dma.hbm_to_vmem [thread:$0]  %s2, 2048, %s42, [#allocation6], 128, 128, 8
    $region13: #{tpu_custom_call.1} parent=1 // pred_fallthru
      _
    // Predicated region
    $region14: #{tpu_custom_call.1} parent=1 // pred_check
      _
    $region15: #{tpu_custom_call.1} parent=1 // pred_check_branch
      %49 = sbr.rel (0) target = $region17
    $region16: #{tpu_custom_call.1} parent=1 // pred_region
      _
    $region17: #{tpu_custom_call.1} parent=1 // pred_fallthru
      _
    // Predicated region
    $region18: #{tpu_custom_call.1} parent=1 // pred_check
      _
    $region19: #{tpu_custom_call.1} parent=1 // pred_check_branch
      %51 = sbr.rel (0) target = $region21
    $region20: #{tpu_custom_call.1} parent=1 // pred_region
      %52 = dma.done [#allocation3], 1024
    $region21: #{tpu_custom_call.1} parent=1 // pred_fallthru
      _
    // Predicated region
    $region22: #{tpu_custom_call.1} parent=1 // pred_check
      _
    $region23: #{tpu_custom_call.1} parent=1 // pred_check_branch
      %54 = sbr.rel (0) target = $region25
    $region24: #{tpu_custom_call.1} parent=1 // pred_region
      %55 = dma.done [#allocation6], 16384
    $region25: #{tpu_custom_call.1} parent=1 // pred_fallthru
      _
    // Predicated region
    $region26: #{tpu_custom_call.1} parent=1 // pred_check
      _
    $region27: #{tpu_custom_call.1} parent=1 // pred_check_branch
      %57 = sbr.rel (0) target = $region29
    $region28: #{tpu_custom_call.1} parent=1 // pred_region
      %58 = dma.done [#allocation6], 2048
    $region29: #{tpu_custom_call.1} parent=1 // pred_fallthru
      _
    %v59 = vld [vmem:[#allocation2] sm:$0xff]
    %v60 = vld [vmem:[#allocation2 + $0x8] sm:$0xff]
    %v61 = vld [vmem:[#allocation2 + $0x10] sm:$0xff]
    %v62 = vld [vmem:[#allocation2 + $0x18] sm:$0xff]
    %v63 = vld [vmem:[#allocation2 + $0x20] sm:$0xff]
    %v64 = vld [vmem:[#allocation2 + $0x28] sm:$0xff]
    %v65 = vld [vmem:[#allocation2 + $0x30] sm:$0xff]
    %v66 = vld [vmem:[#allocation2 + $0x38] sm:$0xff]
    %v67 = vld [vmem:[#allocation5] sm:$0xff]
    %v68 = vld [vmem:[#allocation5 + $0x8] sm:$0xff]
    %v69 = vld [vmem:[#allocation5 + $0x10] sm:$0xff]
    %v70 = vld [vmem:[#allocation5 + $0x18] sm:$0xff]
    %v71 = vld [vmem:[#allocation5 + $0x20] sm:$0xff]
    %v72 = vld [vmem:[#allocation5 + $0x28] sm:$0xff]
    %v73 = vld [vmem:[#allocation5 + $0x30] sm:$0xff]
    %v74 = vld [vmem:[#allocation5 + $0x38] sm:$0xff]
    %v75 = vld [vmem:[#allocation5 + $0x40] sm:$0xff]
    %v76 = vld [vmem:[#allocation5 + $0x48] sm:$0xff]
    %v77 = vld [vmem:[#allocation5 + $0x50] sm:$0xff]
    %v78 = vld [vmem:[#allocation5 + $0x58] sm:$0xff]
    %v79 = vld [vmem:[#allocation5 + $0x60] sm:$0xff]
    %v80 = vld [vmem:[#allocation5 + $0x68] sm:$0xff]
    %v81 = vld [vmem:[#allocation5 + $0x70] sm:$0xff]
    %v82 = vld [vmem:[#allocation5 + $0x78] sm:$0xff]
    %v83 = vld [vmem:[#allocation5 + $0x80] sm:$0xff]
    %v84 = vld [vmem:[#allocation5 + $0x88] sm:$0xff]
    %v85 = vld [vmem:[#allocation5 + $0x90] sm:$0xff]
    %v86 = vld [vmem:[#allocation5 + $0x98] sm:$0xff]
    %v87 = vld [vmem:[#allocation5 + $0xa0] sm:$0xff]
    %v88 = vld [vmem:[#allocation5 + $0xa8] sm:$0xff]
    %v89 = vld [vmem:[#allocation5 + $0xb0] sm:$0xff]
    %v90 = vld [vmem:[#allocation5 + $0xb8] sm:$0xff]
    %v91 = vld [vmem:[#allocation5 + $0xc0] sm:$0xff]
    %v92 = vld [vmem:[#allocation5 + $0xc8] sm:$0xff]
    %v93 = vld [vmem:[#allocation5 + $0xd0] sm:$0xff]
    %v94 = vld [vmem:[#allocation5 + $0xd8] sm:$0xff]
    %v95 = vld [vmem:[#allocation5 + $0xe0] sm:$0xff]
    %v96 = vld [vmem:[#allocation5 + $0xe8] sm:$0xff]
    %v97 = vld [vmem:[#allocation5 + $0xf0] sm:$0xff]
    %v98 = vld [vmem:[#allocation5 + $0xf8] sm:$0xff]
    %v99 = vld [vmem:[#allocation5 + $0x100] sm:$0xff]
    %v100 = vld [vmem:[#allocation5 + $0x108] sm:$0xff]
    %v101 = vld [vmem:[#allocation5 + $0x110] sm:$0xff]
    %v102 = vld [vmem:[#allocation5 + $0x118] sm:$0xff]
    %v103 = vld [vmem:[#allocation5 + $0x120] sm:$0xff]
    %v104 = vld [vmem:[#allocation5 + $0x128] sm:$0xff]
    %v105 = vld [vmem:[#allocation5 + $0x130] sm:$0xff]
    %v106 = vld [vmem:[#allocation5 + $0x138] sm:$0xff]
    %v107 = vld [vmem:[#allocation5 + $0x140] sm:$0xff]
    %v108 = vld [vmem:[#allocation5 + $0x148] sm:$0xff]
    %v109 = vld [vmem:[#allocation5 + $0x150] sm:$0xff]
    %v110 = vld [vmem:[#allocation5 + $0x158] sm:$0xff]
    %v111 = vld [vmem:[#allocation5 + $0x160] sm:$0xff]
    %v112 = vld [vmem:[#allocation5 + $0x168] sm:$0xff]
    %v113 = vld [vmem:[#allocation5 + $0x170] sm:$0xff]
    %v114 = vld [vmem:[#allocation5 + $0x178] sm:$0xff]
    %v115 = vld [vmem:[#allocation5 + $0x180] sm:$0xff]
    %v116 = vld [vmem:[#allocation5 + $0x188] sm:$0xff]
    %v117 = vld [vmem:[#allocation5 + $0x190] sm:$0xff]
    %v118 = vld [vmem:[#allocation5 + $0x198] sm:$0xff]
    %v119 = vld [vmem:[#allocation5 + $0x1a0] sm:$0xff]
    %v120 = vld [vmem:[#allocation5 + $0x1a8] sm:$0xff]
    %v121 = vld [vmem:[#allocation5 + $0x1b0] sm:$0xff]
    %v122 = vld [vmem:[#allocation5 + $0x1b8] sm:$0xff]
    %v123 = vld [vmem:[#allocation5 + $0x1c0] sm:$0xff]
    %v124 = vld [vmem:[#allocation5 + $0x1c8] sm:$0xff]
    %v125 = vld [vmem:[#allocation5 + $0x1d0] sm:$0xff]
    %v126 = vld [vmem:[#allocation5 + $0x1d8] sm:$0xff]
    %v127 = vld [vmem:[#allocation5 + $0x1e0] sm:$0xff]
    %v128 = vld [vmem:[#allocation5 + $0x1e8] sm:$0xff]
    %v129 = vld [vmem:[#allocation5 + $0x1f0] sm:$0xff]
    %v130 = vld [vmem:[#allocation5 + $0x1f8] sm:$0xff]
    %v131 = vld [vmem:[#allocation5 + $0x200] sm:$0xff]
    %v132 = vld [vmem:[#allocation5 + $0x208] sm:$0xff]
    %v133 = vld [vmem:[#allocation5 + $0x210] sm:$0xff]
    %v134 = vld [vmem:[#allocation5 + $0x218] sm:$0xff]
    %v135 = vld [vmem:[#allocation5 + $0x220] sm:$0xff]
    %v136 = vld [vmem:[#allocation5 + $0x228] sm:$0xff]
    %v137 = vld [vmem:[#allocation5 + $0x230] sm:$0xff]
    %v138 = vld [vmem:[#allocation5 + $0x238] sm:$0xff]
    %v139 = vld [vmem:[#allocation5 + $0x240] sm:$0xff]
    %v140 = vld [vmem:[#allocation5 + $0x248] sm:$0xff]
    %v141 = vld [vmem:[#allocation5 + $0x250] sm:$0xff]
    %v142 = vld [vmem:[#allocation5 + $0x258] sm:$0xff]
    %v143 = vld [vmem:[#allocation5 + $0x260] sm:$0xff]
    %v144 = vld [vmem:[#allocation5 + $0x268] sm:$0xff]
    %v145 = vld [vmem:[#allocation5 + $0x270] sm:$0xff]
    %v146 = vld [vmem:[#allocation5 + $0x278] sm:$0xff]
    %v147 = vld [vmem:[#allocation5 + $0x280] sm:$0xff]
    %v148 = vld [vmem:[#allocation5 + $0x288] sm:$0xff]
    %v149 = vld [vmem:[#allocation5 + $0x290] sm:$0xff]
    %v150 = vld [vmem:[#allocation5 + $0x298] sm:$0xff]
    %v151 = vld [vmem:[#allocation5 + $0x2a0] sm:$0xff]
    %v152 = vld [vmem:[#allocation5 + $0x2a8] sm:$0xff]
    %v153 = vld [vmem:[#allocation5 + $0x2b0] sm:$0xff]
    %v154 = vld [vmem:[#allocation5 + $0x2b8] sm:$0xff]
    %v155 = vld [vmem:[#allocation5 + $0x2c0] sm:$0xff]
    %v156 = vld [vmem:[#allocation5 + $0x2c8] sm:$0xff]
    %v157 = vld [vmem:[#allocation5 + $0x2d0] sm:$0xff]
    %v158 = vld [vmem:[#allocation5 + $0x2d8] sm:$0xff]
    %v159 = vld [vmem:[#allocation5 + $0x2e0] sm:$0xff]
    %v160 = vld [vmem:[#allocation5 + $0x2e8] sm:$0xff]
    %v161 = vld [vmem:[#allocation5 + $0x2f0] sm:$0xff]
    %v162 = vld [vmem:[#allocation5 + $0x2f8] sm:$0xff]
    %v163 = vld [vmem:[#allocation5 + $0x300] sm:$0xff]
    %v164 = vld [vmem:[#allocation5 + $0x308] sm:$0xff]
    %v165 = vld [vmem:[#allocation5 + $0x310] sm:$0xff]
    %v166 = vld [vmem:[#allocation5 + $0x318] sm:$0xff]
    %v167 = vld [vmem:[#allocation5 + $0x320] sm:$0xff]
    %v168 = vld [vmem:[#allocation5 + $0x328] sm:$0xff]
    %v169 = vld [vmem:[#allocation5 + $0x330] sm:$0xff]
    %v170 = vld [vmem:[#allocation5 + $0x338] sm:$0xff]
    %v171 = vld [vmem:[#allocation5 + $0x340] sm:$0xff]
    %v172 = vld [vmem:[#allocation5 + $0x348] sm:$0xff]
    %v173 = vld [vmem:[#allocation5 + $0x350] sm:$0xff]
    %v174 = vld [vmem:[#allocation5 + $0x358] sm:$0xff]
    %v175 = vld [vmem:[#allocation5 + $0x360] sm:$0xff]
    %v176 = vld [vmem:[#allocation5 + $0x368] sm:$0xff]
    %v177 = vld [vmem:[#allocation5 + $0x370] sm:$0xff]
    %v178 = vld [vmem:[#allocation5 + $0x378] sm:$0xff]
    %v179 = vld [vmem:[#allocation5 + $0x380] sm:$0xff]
    %v180 = vld [vmem:[#allocation5 + $0x388] sm:$0xff]
    %v181 = vld [vmem:[#allocation5 + $0x390] sm:$0xff]
    %v182 = vld [vmem:[#allocation5 + $0x398] sm:$0xff]
    %v183 = vld [vmem:[#allocation5 + $0x3a0] sm:$0xff]
    %v184 = vld [vmem:[#allocation5 + $0x3a8] sm:$0xff]
    %v185 = vld [vmem:[#allocation5 + $0x3b0] sm:$0xff]
    %v186 = vld [vmem:[#allocation5 + $0x3b8] sm:$0xff]
    %v187 = vld [vmem:[#allocation5 + $0x3c0] sm:$0xff]
    %v188 = vld [vmem:[#allocation5 + $0x3c8] sm:$0xff]
    %v189 = vld [vmem:[#allocation5 + $0x3d0] sm:$0xff]
    %v190 = vld [vmem:[#allocation5 + $0x3d8] sm:$0xff]
    %v191 = vld [vmem:[#allocation5 + $0x3e0] sm:$0xff]
    %v192 = vld [vmem:[#allocation5 + $0x3e8] sm:$0xff]
    %v193 = vld [vmem:[#allocation5 + $0x3f0] sm:$0xff]
    %v194 = vld [vmem:[#allocation5 + $0x3f8] sm:$0xff]
    %v195 = vld [vmem:[%s3] sm:$0x1]
    %v196 = vlaneseq
    %v197 = vshrl.u32 %v196, 7
    %v198 = vsub.s32 0, %v197
    %v199 = vrot.slane %v195, %v198
    %v208 = vcombine.low %v59, %v61
    %v209 = vcombine.high %v59, %v61
    %v210 = vcombine.low %v63, %v65
    %v211 = vcombine.high %v63, %v65
    %v213 = vunpack.c.l.s4 1983009808
    %v214 = vunpack.c.0.s8 %v213
    %v215 = vlaneseq
    %v216 = vshrl.u32 %v215, 7
    %v217 = vsub.s32 %v214, %v216
    %v218 = vrot.slane %v208, %v217
    %v220 = vunpack.c.l.s4 1983009808
    %v221 = vunpack.c.0.s8 %v220
    %v222 = vlaneseq
    %v223 = vshrl.u32 %v222, 7
    %v224 = vsub.s32 %v221, %v223
    %v225 = vrot.slane %v209, %v224
    %v227 = vunpack.c.l.s4 1983009808
    %v228 = vunpack.c.0.s8 %v227
    %v229 = vlaneseq
    %v230 = vshrl.u32 %v229, 7
    %v231 = vsub.s32 %v228, %v230
    %v232 = vrot.slane %v210, %v231
    %v234 = vunpack.c.l.s4 1983009808
    %v235 = vunpack.c.0.s8 %v234
    %v236 = vlaneseq
    %v237 = vshrl.u32 %v236, 7
    %v238 = vsub.s32 %v235, %v237
    %v239 = vrot.slane %v211, %v238
    %v240 = vcombine.low %v218, %v232
    %v241 = vcombine.high %v218, %v232
    %v242 = vcombine.low %v225, %v239
    %v243 = vcombine.high %v225, %v239
    %v244 = vcombine.low %v60, %v62
    %v245 = vcombine.high %v60, %v62
    %v246 = vcombine.low %v64, %v66
    %v247 = vcombine.high %v64, %v66
    %v249 = vunpack.c.l.s4 1983009808
    %v250 = vunpack.c.0.s8 %v249
    %v251 = vlaneseq
    %v252 = vshrl.u32 %v251, 7
    %v253 = vsub.s32 %v250, %v252
    %v254 = vrot.slane %v244, %v253
    %v256 = vunpack.c.l.s4 1983009808
    %v257 = vunpack.c.0.s8 %v256
    %v258 = vlaneseq
    %v259 = vshrl.u32 %v258, 7
    %v260 = vsub.s32 %v257, %v259
    %v261 = vrot.slane %v245, %v260
    %v263 = vunpack.c.l.s4 1983009808
    %v264 = vunpack.c.0.s8 %v263
    %v265 = vlaneseq
    %v266 = vshrl.u32 %v265, 7
    %v267 = vsub.s32 %v264, %v266
    %v268 = vrot.slane %v246, %v267
    %v270 = vunpack.c.l.s4 1983009808
    %v271 = vunpack.c.0.s8 %v270
    %v272 = vlaneseq
    %v273 = vshrl.u32 %v272, 7
    %v274 = vsub.s32 %v271, %v273
    %v275 = vrot.slane %v247, %v274
    %v276 = vcombine.low %v254, %v268
    %v277 = vcombine.high %v254, %v268
    %v278 = vcombine.low %v261, %v275
    %v279 = vcombine.high %v261, %v275
    %288 = vmatprep.subr.mxu0 0.0
    %289 = vmatpush1.msra.mxu0 %v67
    %290 = vmatprep.subr.mxu0 0.0
    %291 = vmatpush1.msra.mxu0 %v68
    %292 = vmatprep.subr.mxu0 0.0
    %293 = vmatpush1.msra.mxu0 %v69
    %294 = vmatprep.subr.mxu0 0.0
    %295 = vmatpush1.msra.mxu0 %v70
    %296 = vmatprep.subr.mxu0 0.0
    %297 = vmatpush1.msra.mxu0 %v71
    %298 = vmatprep.subr.mxu0 0.0
    %299 = vmatpush1.msra.mxu0 %v72
    %300 = vmatprep.subr.mxu0 0.0
    %301 = vmatpush1.msra.mxu0 %v73
    %302 = vmatprep.subr.mxu0 0.0
    %303 = vmatpush1.msra.mxu0 %v74
    %304 = vmatprep.subr.mxu0 0.0
    %305 = vmatpush1.msra.mxu0 %v75
    %306 = vmatprep.subr.mxu0 0.0
    %307 = vmatpush1.msra.mxu0 %v76
    %308 = vmatprep.subr.mxu0 0.0
    %309 = vmatpush1.msra.mxu0 %v77
    %310 = vmatprep.subr.mxu0 0.0
    %311 = vmatpush1.msra.mxu0 %v78
    %312 = vmatprep.subr.mxu0 0.0
    %313 = vmatpush1.msra.mxu0 %v79
    %314 = vmatprep.subr.mxu0 0.0
    %315 = vmatpush1.msra.mxu0 %v80
    %316 = vmatprep.subr.mxu0 0.0
    %317 = vmatpush1.msra.mxu0 %v81
    %318 = vmatprep.subr.mxu0 0.0
    %319 = vmatpush1.msra.mxu0 %v82
    %320 = vmatprep.subr.mxu0 0.0
    %321 = vmatpush1.msra.mxu0 %v83
    %322 = vmatprep.subr.mxu0 0.0
    %323 = vmatpush1.msra.mxu0 %v84
    %324 = vmatprep.subr.mxu0 0.0
    %325 = vmatpush1.msra.mxu0 %v85
    %326 = vmatprep.subr.mxu0 0.0
    %327 = vmatpush1.msra.mxu0 %v86
    %328 = vmatprep.subr.mxu0 0.0
    %329 = vmatpush1.msra.mxu0 %v87
    %330 = vmatprep.subr.mxu0 0.0
    %331 = vmatpush1.msra.mxu0 %v88
    %332 = vmatprep.subr.mxu0 0.0
    %333 = vmatpush1.msra.mxu0 %v89
    %334 = vmatprep.subr.mxu0 0.0
    %335 = vmatpush1.msra.mxu0 %v90
    %336 = vmatprep.subr.mxu0 0.0
    %337 = vmatpush1.msra.mxu0 %v91
    %338 = vmatprep.subr.mxu0 0.0
    %339 = vmatpush1.msra.mxu0 %v92
    %340 = vmatprep.subr.mxu0 0.0
    %341 = vmatpush1.msra.mxu0 %v93
    %342 = vmatprep.subr.mxu0 0.0
    %343 = vmatpush1.msra.mxu0 %v94
    %344 = vmatprep.subr.mxu0 0.0
    %345 = vmatpush1.msra.mxu0 %v95
    %346 = vmatprep.subr.mxu0 0.0
    %347 = vmatpush1.msra.mxu0 %v96
    %348 = vmatprep.subr.mxu0 0.0
    %349 = vmatpush1.msra.mxu0 %v97
    %350 = vmatprep.subr.mxu0 0.0
    %351 = vmatpush1.msra.mxu0 %v98
    %352 = vmatprep.mubr.f32.mxu0 %v241
    %353 = vmatmul.mubr.f32.gmra.mrb[0].mxu0 %v240
    %v354 = vpop.f32.mrb[0].mxu0
    %v355 = vadd.f32 %v199, %v354
    %v356 = vpop.f32.mrb[0].mxu0
    %357 = vdwg.mxu0
    %358 = vmatprep.subr.mxu0 0.0
    %359 = vmatpush1.msra.mxu0 %v99
    %360 = vmatprep.subr.mxu0 0.0
    %361 = vmatpush1.msra.mxu0 %v100
    %362 = vmatprep.subr.mxu0 0.0
    %363 = vmatpush1.msra.mxu0 %v101
    %364 = vmatprep.subr.mxu0 0.0
    %365 = vmatpush1.msra.mxu0 %v102
    %366 = vmatprep.subr.mxu0 0.0
    %367 = vmatpush1.msra.mxu0 %v103
    %368 = vmatprep.subr.mxu0 0.0
    %369 = vmatpush1.msra.mxu0 %v104
    %370 = vmatprep.subr.mxu0 0.0
    %371 = vmatpush1.msra.mxu0 %v105
    %372 = vmatprep.subr.mxu0 0.0
    %373 = vmatpush1.msra.mxu0 %v106
    %374 = vmatprep.subr.mxu0 0.0
    %375 = vmatpush1.msra.mxu0 %v107
    %376 = vmatprep.subr.mxu0 0.0
    %377 = vmatpush1.msra.mxu0 %v108
    %378 = vmatprep.subr.mxu0 0.0
    %379 = vmatpush1.msra.mxu0 %v109
    %380 = vmatprep.subr.mxu0 0.0
    %381 = vmatpush1.msra.mxu0 %v110
    %382 = vmatprep.subr.mxu0 0.0
    %383 = vmatpush1.msra.mxu0 %v111
    %384 = vmatprep.subr.mxu0 0.0
    %385 = vmatpush1.msra.mxu0 %v112
    %386 = vmatprep.subr.mxu0 0.0
    %387 = vmatpush1.msra.mxu0 %v113
    %388 = vmatprep.subr.mxu0 0.0
    %389 = vmatpush1.msra.mxu0 %v114
    %390 = vmatprep.subr.mxu0 0.0
    %391 = vmatpush1.msra.mxu0 %v115
    %392 = vmatprep.subr.mxu0 0.0
    %393 = vmatpush1.msra.mxu0 %v116
    %394 = vmatprep.subr.mxu0 0.0
    %395 = vmatpush1.msra.mxu0 %v117
    %396 = vmatprep.subr.mxu0 0.0
    %397 = vmatpush1.msra.mxu0 %v118
    %398 = vmatprep.subr.mxu0 0.0
    %399 = vmatpush1.msra.mxu0 %v119
    %400 = vmatprep.subr.mxu0 0.0
    %401 = vmatpush1.msra.mxu0 %v120
    %402 = vmatprep.subr.mxu0 0.0
    %403 = vmatpush1.msra.mxu0 %v121
    %404 = vmatprep.subr.mxu0 0.0
    %405 = vmatpush1.msra.mxu0 %v122
    %406 = vmatprep.subr.mxu0 0.0
    %407 = vmatpush1.msra.mxu0 %v123
    %408 = vmatprep.subr.mxu0 0.0
    %409 = vmatpush1.msra.mxu0 %v124
    %410 = vmatprep.subr.mxu0 0.0
    %411 = vmatpush1.msra.mxu0 %v125
    %412 = vmatprep.subr.mxu0 0.0
    %413 = vmatpush1.msra.mxu0 %v126
    %414 = vmatprep.subr.mxu0 0.0
    %415 = vmatpush1.msra.mxu0 %v127
    %416 = vmatprep.subr.mxu0 0.0
    %417 = vmatpush1.msra.mxu0 %v128
    %418 = vmatprep.subr.mxu0 0.0
    %419 = vmatpush1.msra.mxu0 %v129
    %420 = vmatprep.subr.mxu0 0.0
    %421 = vmatpush1.msra.mxu0 %v130
    %422 = vmatprep.mubr.f32.mxu0 %v243
    %423 = vmatmul.mubr.f32.gmra.mrb[0].mxu0 %v242
    %v424 = vpop.f32.mrb[0].mxu0
    %v425 = vadd.f32 %v355, %v424
    %v426 = vpop.f32.mrb[0].mxu0
    %427 = vdwg.mxu0
    %428 = vmatprep.subr.mxu0 0.0
    %429 = vmatpush1.msra.mxu0 %v131
    %430 = vmatprep.subr.mxu0 0.0
    %431 = vmatpush1.msra.mxu0 %v132
    %432 = vmatprep.subr.mxu0 0.0
    %433 = vmatpush1.msra.mxu0 %v133
    %434 = vmatprep.subr.mxu0 0.0
    %435 = vmatpush1.msra.mxu0 %v134
    %436 = vmatprep.subr.mxu0 0.0
    %437 = vmatpush1.msra.mxu0 %v135
    %438 = vmatprep.subr.mxu0 0.0
    %439 = vmatpush1.msra.mxu0 %v136
    %440 = vmatprep.subr.mxu0 0.0
    %441 = vmatpush1.msra.mxu0 %v137
    %442 = vmatprep.subr.mxu0 0.0
    %443 = vmatpush1.msra.mxu0 %v138
    %444 = vmatprep.subr.mxu0 0.0
    %445 = vmatpush1.msra.mxu0 %v139
    %446 = vmatprep.subr.mxu0 0.0
    %447 = vmatpush1.msra.mxu0 %v140
    %448 = vmatprep.subr.mxu0 0.0
    %449 = vmatpush1.msra.mxu0 %v141
    %450 = vmatprep.subr.mxu0 0.0
    %451 = vmatpush1.msra.mxu0 %v142
    %452 = vmatprep.subr.mxu0 0.0
    %453 = vmatpush1.msra.mxu0 %v143
    %454 = vmatprep.subr.mxu0 0.0
    %455 = vmatpush1.msra.mxu0 %v144
    %456 = vmatprep.subr.mxu0 0.0
    %457 = vmatpush1.msra.mxu0 %v145
    %458 = vmatprep.subr.mxu0 0.0
    %459 = vmatpush1.msra.mxu0 %v146
    %460 = vmatprep.subr.mxu0 0.0
    %461 = vmatpush1.msra.mxu0 %v147
    %462 = vmatprep.subr.mxu0 0.0
    %463 = vmatpush1.msra.mxu0 %v148
    %464 = vmatprep.subr.mxu0 0.0
    %465 = vmatpush1.msra.mxu0 %v149
    %466 = vmatprep.subr.mxu0 0.0
    %467 = vmatpush1.msra.mxu0 %v150
    %468 = vmatprep.subr.mxu0 0.0
    %469 = vmatpush1.msra.mxu0 %v151
    %470 = vmatprep.subr.mxu0 0.0
    %471 = vmatpush1.msra.mxu0 %v152
    %472 = vmatprep.subr.mxu0 0.0
    %473 = vmatpush1.msra.mxu0 %v153
    %474 = vmatprep.subr.mxu0 0.0
    %475 = vmatpush1.msra.mxu0 %v154
    %476 = vmatprep.subr.mxu0 0.0
    %477 = vmatpush1.msra.mxu0 %v155
    %478 = vmatprep.subr.mxu0 0.0
    %479 = vmatpush1.msra.mxu0 %v156
    %480 = vmatprep.subr.mxu0 0.0
    %481 = vmatpush1.msra.mxu0 %v157
    %482 = vmatprep.subr.mxu0 0.0
    %483 = vmatpush1.msra.mxu0 %v158
    %484 = vmatprep.subr.mxu0 0.0
    %485 = vmatpush1.msra.mxu0 %v159
    %486 = vmatprep.subr.mxu0 0.0
    %487 = vmatpush1.msra.mxu0 %v160
    %488 = vmatprep.subr.mxu0 0.0
    %489 = vmatpush1.msra.mxu0 %v161
    %490 = vmatprep.subr.mxu0 0.0
    %491 = vmatpush1.msra.mxu0 %v162
    %492 = vmatprep.mubr.f32.mxu0 %v277
    %493 = vmatmul.mubr.f32.gmra.mrb[0].mxu0 %v276
    %v494 = vpop.f32.mrb[0].mxu0
    %v495 = vadd.f32 %v425, %v494
    %v496 = vpop.f32.mrb[0].mxu0
    %497 = vdwg.mxu0
    %498 = vmatprep.subr.mxu0 0.0
    %499 = vmatpush1.msra.mxu0 %v163
    %500 = vmatprep.subr.mxu0 0.0
    %501 = vmatpush1.msra.mxu0 %v164
    %502 = vmatprep.subr.mxu0 0.0
    %503 = vmatpush1.msra.mxu0 %v165
    %504 = vmatprep.subr.mxu0 0.0
    %505 = vmatpush1.msra.mxu0 %v166
    %506 = vmatprep.subr.mxu0 0.0
    %507 = vmatpush1.msra.mxu0 %v167
    %508 = vmatprep.subr.mxu0 0.0
    %509 = vmatpush1.msra.mxu0 %v168
    %510 = vmatprep.subr.mxu0 0.0
    %511 = vmatpush1.msra.mxu0 %v169
    %512 = vmatprep.subr.mxu0 0.0
    %513 = vmatpush1.msra.mxu0 %v170
    %514 = vmatprep.subr.mxu0 0.0
    %515 = vmatpush1.msra.mxu0 %v171
    %516 = vmatprep.subr.mxu0 0.0
    %517 = vmatpush1.msra.mxu0 %v172
    %518 = vmatprep.subr.mxu0 0.0
    %519 = vmatpush1.msra.mxu0 %v173
    %520 = vmatprep.subr.mxu0 0.0
    %521 = vmatpush1.msra.mxu0 %v174
    %522 = vmatprep.subr.mxu0 0.0
    %523 = vmatpush1.msra.mxu0 %v175
    %524 = vmatprep.subr.mxu0 0.0
    %525 = vmatpush1.msra.mxu0 %v176
    %526 = vmatprep.subr.mxu0 0.0
    %527 = vmatpush1.msra.mxu0 %v177
    %528 = vmatprep.subr.mxu0 0.0
    %529 = vmatpush1.msra.mxu0 %v178
    %530 = vmatprep.subr.mxu0 0.0
    %531 = vmatpush1.msra.mxu0 %v179
    %532 = vmatprep.subr.mxu0 0.0
    %533 = vmatpush1.msra.mxu0 %v180
    %534 = vmatprep.subr.mxu0 0.0
    %535 = vmatpush1.msra.mxu0 %v181
    %536 = vmatprep.subr.mxu0 0.0
    %537 = vmatpush1.msra.mxu0 %v182
    %538 = vmatprep.subr.mxu0 0.0
    %539 = vmatpush1.msra.mxu0 %v183
    %540 = vmatprep.subr.mxu0 0.0
    %541 = vmatpush1.msra.mxu0 %v184
    %542 = vmatprep.subr.mxu0 0.0
    %543 = vmatpush1.msra.mxu0 %v185
    %544 = vmatprep.subr.mxu0 0.0
    %545 = vmatpush1.msra.mxu0 %v186
    %546 = vmatprep.subr.mxu0 0.0
    %547 = vmatpush1.msra.mxu0 %v187
    %548 = vmatprep.subr.mxu0 0.0
    %549 = vmatpush1.msra.mxu0 %v188
    %550 = vmatprep.subr.mxu0 0.0
    %551 = vmatpush1.msra.mxu0 %v189
    %552 = vmatprep.subr.mxu0 0.0
    %553 = vmatpush1.msra.mxu0 %v190
    %554 = vmatprep.subr.mxu0 0.0
    %555 = vmatpush1.msra.mxu0 %v191
    %556 = vmatprep.subr.mxu0 0.0
    %557 = vmatpush1.msra.mxu0 %v192
    %558 = vmatprep.subr.mxu0 0.0
    %559 = vmatpush1.msra.mxu0 %v193
    %560 = vmatprep.subr.mxu0 0.0
    %561 = vmatpush1.msra.mxu0 %v194
    %562 = vmatprep.mubr.f32.mxu0 %v279
    %563 = vmatmul.mubr.f32.gmra.mrb[0].mxu0 %v278
    %v564 = vpop.f32.mrb[0].mxu0
    %v565 = vadd.f32 %v495, %v564
    %v566 = vpop.f32.mrb[0].mxu0
    %567 = vdwg.mxu0
    %v568 = vmax.f32 %v565, 0.0
    %v569 = vld [vmem:[#allocation7] sm:$0xff]
    %v570 = vld [vmem:[#allocation7 + $0x8] sm:$0xff]
    %v571 = vld [vmem:[#allocation7 + $0x10] sm:$0xff]
    %v572 = vld [vmem:[#allocation7 + $0x18] sm:$0xff]
    %v573 = vld [vmem:[#allocation7 + $0x20] sm:$0xff]
    %v574 = vld [vmem:[#allocation7 + $0x28] sm:$0xff]
    %v575 = vld [vmem:[#allocation7 + $0x30] sm:$0xff]
    %v576 = vld [vmem:[#allocation7 + $0x38] sm:$0xff]
    %v577 = vld [vmem:[#allocation7 + $0x40] sm:$0xff]
    %v578 = vld [vmem:[#allocation7 + $0x48] sm:$0xff]
    %v579 = vld [vmem:[#allocation7 + $0x50] sm:$0xff]
    %v580 = vld [vmem:[#allocation7 + $0x58] sm:$0xff]
    %v581 = vld [vmem:[#allocation7 + $0x60] sm:$0xff]
    %v582 = vld [vmem:[#allocation7 + $0x68] sm:$0xff]
    %v583 = vld [vmem:[#allocation7 + $0x70] sm:$0xff]
    %v584 = vld [vmem:[#allocation7 + $0x78] sm:$0xff]
    %v585 = vld [vmem:[%s3 + $0x1] sm:$0x1]
    %v586 = vlaneseq
    %v587 = vshrl.u32 %v586, 7
    %v588 = vsub.s32 0, %v587
    %v589 = vrot.slane %v585, %v588
    %590 = vmatprep.subr.mxu0 0.0
    %591 = vmatpush1.msra.mxu0 %v569
    %592 = vmatprep.subr.mxu0 0.0
    %593 = vmatpush1.msra.mxu0 %v570
    %594 = vmatprep.subr.mxu0 0.0
    %595 = vmatpush1.msra.mxu0 %v571
    %596 = vmatprep.subr.mxu0 0.0
    %597 = vmatpush1.msra.mxu0 %v572
    %598 = vmatprep.subr.mxu0 0.0
    %599 = vmatpush1.msra.mxu0 %v573
    %600 = vmatprep.subr.mxu0 0.0
    %601 = vmatpush1.msra.mxu0 %v574
    %602 = vmatprep.subr.mxu0 0.0
    %603 = vmatpush1.msra.mxu0 %v575
    %604 = vmatprep.subr.mxu0 0.0
    %605 = vmatpush1.msra.mxu0 %v576
    %606 = vmatprep.subr.mxu0 0.0
    %607 = vmatpush1.msra.mxu0 %v577
    %608 = vmatprep.subr.mxu0 0.0
    %609 = vmatpush1.msra.mxu0 %v578
    %610 = vmatprep.subr.mxu0 0.0
    %611 = vmatpush1.msra.mxu0 %v579
    %612 = vmatprep.subr.mxu0 0.0
    %613 = vmatpush1.msra.mxu0 %v580
    %614 = vmatprep.subr.mxu0 0.0
    %615 = vmatpush1.msra.mxu0 %v581
    %616 = vmatprep.subr.mxu0 0.0
    %617 = vmatpush1.msra.mxu0 %v582
    %618 = vmatprep.subr.mxu0 0.0
    %619 = vmatpush1.msra.mxu0 %v583
    %620 = vmatprep.subr.mxu0 0.0
    %621 = vmatpush1.msra.mxu0 %v584
    %622 = vmatprep.subr.mxu0 0.0
    %623 = vmatpush1.msra.mxu0 0.0
    %624 = vmatprep.subr.mxu0 0.0
    %625 = vmatpush1.msra.mxu0 0.0
    %626 = vmatprep.subr.mxu0 0.0
    %627 = vmatpush1.msra.mxu0 0.0
    %628 = vmatprep.subr.mxu0 0.0
    %629 = vmatpush1.msra.mxu0 0.0
    %630 = vmatprep.subr.mxu0 0.0
    %631 = vmatpush1.msra.mxu0 0.0
    %632 = vmatprep.subr.mxu0 0.0
    %633 = vmatpush1.msra.mxu0 0.0
    %634 = vmatprep.subr.mxu0 0.0
    %635 = vmatpush1.msra.mxu0 0.0
    %636 = vmatprep.subr.mxu0 0.0
    %637 = vmatpush1.msra.mxu0 0.0
    %638 = vmatprep.subr.mxu0 0.0
    %639 = vmatpush1.msra.mxu0 0.0
    %640 = vmatprep.subr.mxu0 0.0
    %641 = vmatpush1.msra.mxu0 0.0
    %642 = vmatprep.subr.mxu0 0.0
    %643 = vmatpush1.msra.mxu0 0.0
    %644 = vmatprep.subr.mxu0 0.0
    %645 = vmatpush1.msra.mxu0 0.0
    %646 = vmatprep.subr.mxu0 0.0
    %647 = vmatpush1.msra.mxu0 0.0
    %648 = vmatprep.subr.mxu0 0.0
    %649 = vmatpush1.msra.mxu0 0.0
    %650 = vmatprep.subr.mxu0 0.0
    %651 = vmatpush1.msra.mxu0 0.0
    %652 = vmatprep.subr.mxu0 0.0
    %653 = vmatpush1.msra.mxu0 0.0
    %654 = vmatprep.mubr.f32.mxu0 0.0
    %655 = vmatmul.mubr.f32.gmra.mrb[0].mxu0 %v568
    %v656 = vpop.f32.mrb[0].mxu0
    %v657 = vadd.f32 %v589, %v656
    %v658 = vpop.f32.mrb[0].mxu0
    %659 = vdwg.mxu0
    %v660 = vmax.f32 %v657, 0.0
    %661 = vst [vmem:[#allocation8] sm:$0xff] %v660
    // Predicated region
    $region30: #{tpu_custom_call.1} parent=1 // pred_check
      _
    $region31: #{tpu_custom_call.1} parent=1 // pred_check_branch
      %663 = sbr.rel (0) target = $region33
    $region32: #{tpu_custom_call.1} parent=1 // pred_region
      %s665 = ssub.s32 128, 32
      %666 = vsyncadd [#allocation4], %s665
      %s667 = sshll.u32 [#allocation8], 4
      %s668 = int_to_ptr.vmem [resolvable:$true] %s667
      %673 = dma.vmem_to_hbm [thread:$0]  %s668, 32, %s4, [#allocation4], 32, 32, 2
    $region33: #{tpu_custom_call.1} parent=1 // pred_fallthru
      _
    // Predicated region
    $region34: #{tpu_custom_call.1} parent=1 // pred_check
      _
    $region35: #{tpu_custom_call.1} parent=1 // pred_check_branch
      %675 = sbr.rel (0) target = $region37
    $region36: #{tpu_custom_call.1} parent=1 // pred_region
      %676 = dma.done [#allocation4], 128
    $region37: #{tpu_custom_call.1} parent=1 // pred_fallthru
      _
    %677 = vsyncpa [#allocation3], 1
    %678 = vsyncpa [#allocation6], 1
    %679 = vsyncpa [#allocation4], 1

// kernel: tpu_custom_call.1
$region0: #{tpu_custom_call.1}
  #allocation0 [shape = 'u32[]', space=smem, size = 0x4, offset = 0x4, fixed_abs, tag = 'smem constant byte address 0x4 - core index']
  #allocation1 [shape = 'u32[144,128]{1,0:T(1,128)}', space=vmem, size = 0x12000, scoped, tag = 'internal scratch']
  %s0 = inlined_call_operand.hbm [shape: f32[2,1024], index: 0, kind: input, shape index: {}]
  %s1 = inlined_call_operand.hbm [shape: f32[1024,128], index: 1, kind: input, shape index: {}]
  %s2 = inlined_call_operand.hbm [shape: f32[128,128], index: 2, kind: input, shape index: {}]
  %s3 = inlined_call_operand.vmem [shape: f32[2,128], index: 3, kind: input, shape index: {}]
  %s4 = inlined_call_operand.hbm [shape: f32[2,128], index: 4, kind: output, shape index: {}]
  %s5 = sld [smem:[#allocation0]]
  $region38: #{tpu_custom_call.1} parent=0
    _
  %s7 = ssub.s32 1, %s5
  %s8 = scalar_select 0, %s7, %s5
  $region1: #{tpu_custom_call.1} parent=0
    #allocation2 [shape = 'u8[32768]{0}', space=vmem, size = 0x8000, scoped, tag = 'input window, operand 0, single buffered']
    #allocation3 [shape = 's32[1]{0}', space=sflag, size = 0x4, scoped, tag = 'scoped memory for tpu_custom_call.1']
    #allocation4 [shape = 's32[1]{0}', space=sflag, size = 0x4, scoped, tag = 'scoped memory for tpu_custom_call.1']
    #allocation5 [shape = 'u8[524288]{0}', space=vmem, size = 0x80000, scoped, tag = 'input window, operand 1, single buffered']
    #allocation6 [shape = 's32[1]{0}', space=sflag, size = 0x4, scoped, tag = 'scoped memory for tpu_custom_call.1']
    #allocation7 [shape = 'u8[65536]{0}', space=vmem, size = 0x10000, scoped, tag = 'input window, operand 2, single buffered']
    #allocation8 [shape = 'u8[4096]{0}', space=vmem, size = 0x1000, scoped, tag = 'output window, operand 0, single buffered']
    %9 = vsyncpa [#allocation3], 0
    %10 = vsyncpa [#allocation6], 0
    %11 = vsyncpa [#allocation4], 0
    // Predicated region
    $region2: #{tpu_custom_call.1} parent=1 // pred_check
      _
    $region3: #{tpu_custom_call.1} parent=1 // pred_check_branch
      %13 = sbr.rel (0) target = $region5
    $region4: #{tpu_custom_call.1} parent=1 // pred_region
      %s15 = ssub.s32 1024, 256
      %16 = vsyncadd [#allocation3], %s15
      %s17 = sshll.u32 [#allocation2], 4
      %s18 = int_to_ptr.vmem [resolvable:$true] %s17
      %23 = dma.hbm_to_vmem [thread:$0]  %s0, 256, %s18, [#allocation3], 256, 256, 16
    $region5: #{tpu_custom_call.1} parent=1 // pred_fallthru
      _
    // Predicated region
    $region6: #{tpu_custom_call.1} parent=1 // pred_check
      _
    $region7: #{tpu_custom_call.1} parent=1 // pred_check_branch
      %25 = sbr.rel (0) target = $region9
    $region8: #{tpu_custom_call.1} parent=1 // pred_region
      %s27 = ssub.s32 16384, 16384
      %28 = vsyncadd [#allocation6], %s27
      %s29 = sshll.u32 [#allocation5], 4
      %s30 = int_to_ptr.vmem [resolvable:$true] %s29
      %35 = dma.hbm_to_vmem [thread:$0]  %s1, 16384, %s30, [#allocation6], 128, 128, 8
    $region9: #{tpu_custom_call.1} parent=1 // pred_fallthru
      _
    // Predicated region
    $region10: #{tpu_custom_call.1} parent=1 // pred_check
      _
    $region11: #{tpu_custom_call.1} parent=1 // pred_check_branch
      %37 = sbr.rel (0) target = $region13
    $region12: #{tpu_custom_call.1} parent=1 // pred_region
      %s39 = ssub.s32 2048, 2048
      %40 = vsyncadd [#allocation6], %s39
      %s41 = sshll.u32 [#allocation7], 4
      %s42 = int_to_ptr.vmem [resolvable:$true] %s41
      %47 = dma.hbm_to_vmem [thread:$0]  %s2, 2048, %s42, [#allocation6], 128, 128, 8
    $region13: #{tpu_custom_call.1} parent=1 // pred_fallthru
      _
    // Predicated region
    $region14: #{tpu_custom_call.1} parent=1 // pred_check
      _
    $region15: #{tpu_custom_call.1} parent=1 // pred_check_branch
      %49 = sbr.rel (0) target = $region17
    $region16: #{tpu_custom_call.1} parent=1 // pred_region
      _
    $region17: #{tpu_custom_call.1} parent=1 // pred_fallthru
      _
    // Predicated region
    $region18: #{tpu_custom_call.1} parent=1 // pred_check
      _
    $region19: #{tpu_custom_call.1} parent=1 // pred_check_branch
      %51 = sbr.rel (0) target = $region21
    $region20: #{tpu_custom_call.1} parent=1 // pred_region
      %52 = dma.done [#allocation3], 1024
    $region21: #{tpu_custom_call.1} parent=1 // pred_fallthru
      _
    // Predicated region
    $region22: #{tpu_custom_call.1} parent=1 // pred_check
      _
    $region23: #{tpu_custom_call.1} parent=1 // pred_check_branch
      %54 = sbr.rel (0) target = $region25
    $region24: #{tpu_custom_call.1} parent=1 // pred_region
      %55 = dma.done [#allocation6], 16384
    $region25: #{tpu_custom_call.1} parent=1 // pred_fallthru
      _
    // Predicated region
    $region26: #{tpu_custom_call.1} parent=1 // pred_check
      _
    $region27: #{tpu_custom_call.1} parent=1 // pred_check_branch
      %57 = sbr.rel (0) target = $region29
    $region28: #{tpu_custom_call.1} parent=1 // pred_region
      %58 = dma.done [#allocation6], 2048
    $region29: #{tpu_custom_call.1} parent=1 // pred_fallthru
      _
    %v59 = vld [vmem:[#allocation2] sm:$0xff]
    %v60 = vld [vmem:[#allocation2 + $0x8] sm:$0xff]
    %v61 = vld [vmem:[#allocation2 + $0x10] sm:$0xff]
    %v62 = vld [vmem:[#allocation2 + $0x18] sm:$0xff]
    %v63 = vld [vmem:[#allocation2 + $0x20] sm:$0xff]
    %v64 = vld [vmem:[#allocation2 + $0x28] sm:$0xff]
    %v65 = vld [vmem:[#allocation2 + $0x30] sm:$0xff]
    %v66 = vld [vmem:[#allocation2 + $0x38] sm:$0xff]
    %v67 = vld [vmem:[#allocation5] sm:$0xff]
    %v68 = vld [vmem:[#allocation5 + $0x8] sm:$0xff]
    %v69 = vld [vmem:[#allocation5 + $0x10] sm:$0xff]
    %v70 = vld [vmem:[#allocation5 + $0x18] sm:$0xff]
    %v71 = vld [vmem:[#allocation5 + $0x20] sm:$0xff]
    %v72 = vld [vmem:[#allocation5 + $0x28] sm:$0xff]
    %v73 = vld [vmem:[#allocation5 + $0x30] sm:$0xff]
    %v74 = vld [vmem:[#allocation5 + $0x38] sm:$0xff]
    %v75 = vld [vmem:[#allocation5 + $0x40] sm:$0xff]
    %v76 = vld [vmem:[#allocation5 + $0x48] sm:$0xff]
    %v77 = vld [vmem:[#allocation5 + $0x50] sm:$0xff]
    %v78 = vld [vmem:[#allocation5 + $0x58] sm:$0xff]
    %v79 = vld [vmem:[#allocation5 + $0x60] sm:$0xff]
    %v80 = vld [vmem:[#allocation5 + $0x68] sm:$0xff]
    %v81 = vld [vmem:[#allocation5 + $0x70] sm:$0xff]
    %v82 = vld [vmem:[#allocation5 + $0x78] sm:$0xff]
    %v83 = vld [vmem:[#allocation5 + $0x80] sm:$0xff]
    %v84 = vld [vmem:[#allocation5 + $0x88] sm:$0xff]
    %v85 = vld [vmem:[#allocation5 + $0x90] sm:$0xff]
    %v86 = vld [vmem:[#allocation5 + $0x98] sm:$0xff]
    %v87 = vld [vmem:[#allocation5 + $0xa0] sm:$0xff]
    %v88 = vld [vmem:[#allocation5 + $0xa8] sm:$0xff]
    %v89 = vld [vmem:[#allocation5 + $0xb0] sm:$0xff]
    %v90 = vld [vmem:[#allocation5 + $0xb8] sm:$0xff]
    %v91 = vld [vmem:[#allocation5 + $0xc0] sm:$0xff]
    %v92 = vld [vmem:[#allocation5 + $0xc8] sm:$0xff]
    %v93 = vld [vmem:[#allocation5 + $0xd0] sm:$0xff]
    %v94 = vld [vmem:[#allocation5 + $0xd8] sm:$0xff]
    %v95 = vld [vmem:[#allocation5 + $0xe0] sm:$0xff]
    %v96 = vld [vmem:[#allocation5 + $0xe8] sm:$0xff]
    %v97 = vld [vmem:[#allocation5 + $0xf0] sm:$0xff]
    %v98 = vld [vmem:[#allocation5 + $0xf8] sm:$0xff]
    %v99 = vld [vmem:[#allocation5 + $0x100] sm:$0xff]
    %v100 = vld [vmem:[#allocation5 + $0x108] sm:$0xff]
    %v101 = vld [vmem:[#allocation5 + $0x110] sm:$0xff]
    %v102 = vld [vmem:[#allocation5 + $0x118] sm:$0xff]
    %v103 = vld [vmem:[#allocation5 + $0x120] sm:$0xff]
    %v104 = vld [vmem:[#allocation5 + $0x128] sm:$0xff]
    %v105 = vld [vmem:[#allocation5 + $0x130] sm:$0xff]
    %v106 = vld [vmem:[#allocation5 + $0x138] sm:$0xff]
    %v107 = vld [vmem:[#allocation5 + $0x140] sm:$0xff]
    %v108 = vld [vmem:[#allocation5 + $0x148] sm:$0xff]
    %v109 = vld [vmem:[#allocation5 + $0x150] sm:$0xff]
    %v110 = vld [vmem:[#allocation5 + $0x158] sm:$0xff]
    %v111 = vld [vmem:[#allocation5 + $0x160] sm:$0xff]
    %v112 = vld [vmem:[#allocation5 + $0x168] sm:$0xff]
    %v113 = vld [vmem:[#allocation5 + $0x170] sm:$0xff]
    %v114 = vld [vmem:[#allocation5 + $0x178] sm:$0xff]
    %v115 = vld [vmem:[#allocation5 + $0x180] sm:$0xff]
    %v116 = vld [vmem:[#allocation5 + $0x188] sm:$0xff]
    %v117 = vld [vmem:[#allocation5 + $0x190] sm:$0xff]
    %v118 = vld [vmem:[#allocation5 + $0x198] sm:$0xff]
    %v119 = vld [vmem:[#allocation5 + $0x1a0] sm:$0xff]
    %v120 = vld [vmem:[#allocation5 + $0x1a8] sm:$0xff]
    %v121 = vld [vmem:[#allocation5 + $0x1b0] sm:$0xff]
    %v122 = vld [vmem:[#allocation5 + $0x1b8] sm:$0xff]
    %v123 = vld [vmem:[#allocation5 + $0x1c0] sm:$0xff]
    %v124 = vld [vmem:[#allocation5 + $0x1c8] sm:$0xff]
    %v125 = vld [vmem:[#allocation5 + $0x1d0] sm:$0xff]
    %v126 = vld [vmem:[#allocation5 + $0x1d8] sm:$0xff]
    %v127 = vld [vmem:[#allocation5 + $0x1e0] sm:$0xff]
    %v128 = vld [vmem:[#allocation5 + $0x1e8] sm:$0xff]
    %v129 = vld [vmem:[#allocation5 + $0x1f0] sm:$0xff]
    %v130 = vld [vmem:[#allocation5 + $0x1f8] sm:$0xff]
    %v131 = vld [vmem:[#allocation5 + $0x200] sm:$0xff]
    %v132 = vld [vmem:[#allocation5 + $0x208] sm:$0xff]
    %v133 = vld [vmem:[#allocation5 + $0x210] sm:$0xff]
    %v134 = vld [vmem:[#allocation5 + $0x218] sm:$0xff]
    %v135 = vld [vmem:[#allocation5 + $0x220] sm:$0xff]
    %v136 = vld [vmem:[#allocation5 + $0x228] sm:$0xff]
    %v137 = vld [vmem:[#allocation5 + $0x230] sm:$0xff]
    %v138 = vld [vmem:[#allocation5 + $0x238] sm:$0xff]
    %v139 = vld [vmem:[#allocation5 + $0x240] sm:$0xff]
    %v140 = vld [vmem:[#allocation5 + $0x248] sm:$0xff]
    %v141 = vld [vmem:[#allocation5 + $0x250] sm:$0xff]
    %v142 = vld [vmem:[#allocation5 + $0x258] sm:$0xff]
    %v143 = vld [vmem:[#allocation5 + $0x260] sm:$0xff]
    %v144 = vld [vmem:[#allocation5 + $0x268] sm:$0xff]
    %v145 = vld [vmem:[#allocation5 + $0x270] sm:$0xff]
    %v146 = vld [vmem:[#allocation5 + $0x278] sm:$0xff]
    %v147 = vld [vmem:[#allocation5 + $0x280] sm:$0xff]
    %v148 = vld [vmem:[#allocation5 + $0x288] sm:$0xff]
    %v149 = vld [vmem:[#allocation5 + $0x290] sm:$0xff]
    %v150 = vld [vmem:[#allocation5 + $0x298] sm:$0xff]
    %v151 = vld [vmem:[#allocation5 + $0x2a0] sm:$0xff]
    %v152 = vld [vmem:[#allocation5 + $0x2a8] sm:$0xff]
    %v153 = vld [vmem:[#allocation5 + $0x2b0] sm:$0xff]
    %v154 = vld [vmem:[#allocation5 + $0x2b8] sm:$0xff]
    %v155 = vld [vmem:[#allocation5 + $0x2c0] sm:$0xff]
    %v156 = vld [vmem:[#allocation5 + $0x2c8] sm:$0xff]
    %v157 = vld [vmem:[#allocation5 + $0x2d0] sm:$0xff]
    %v158 = vld [vmem:[#allocation5 + $0x2d8] sm:$0xff]
    %v159 = vld [vmem:[#allocation5 + $0x2e0] sm:$0xff]
    %v160 = vld [vmem:[#allocation5 + $0x2e8] sm:$0xff]
    %v161 = vld [vmem:[#allocation5 + $0x2f0] sm:$0xff]
    %v162 = vld [vmem:[#allocation5 + $0x2f8] sm:$0xff]
    %v163 = vld [vmem:[#allocation5 + $0x300] sm:$0xff]
    %v164 = vld [vmem:[#allocation5 + $0x308] sm:$0xff]
    %v165 = vld [vmem:[#allocation5 + $0x310] sm:$0xff]
    %v166 = vld [vmem:[#allocation5 + $0x318] sm:$0xff]
    %v167 = vld [vmem:[#allocation5 + $0x320] sm:$0xff]
    %v168 = vld [vmem:[#allocation5 + $0x328] sm:$0xff]
    %v169 = vld [vmem:[#allocation5 + $0x330] sm:$0xff]
    %v170 = vld [vmem:[#allocation5 + $0x338] sm:$0xff]
    %v171 = vld [vmem:[#allocation5 + $0x340] sm:$0xff]
    %v172 = vld [vmem:[#allocation5 + $0x348] sm:$0xff]
    %v173 = vld [vmem:[#allocation5 + $0x350] sm:$0xff]
    %v174 = vld [vmem:[#allocation5 + $0x358] sm:$0xff]
    %v175 = vld [vmem:[#allocation5 + $0x360] sm:$0xff]
    %v176 = vld [vmem:[#allocation5 + $0x368] sm:$0xff]
    %v177 = vld [vmem:[#allocation5 + $0x370] sm:$0xff]
    %v178 = vld [vmem:[#allocation5 + $0x378] sm:$0xff]
    %v179 = vld [vmem:[#allocation5 + $0x380] sm:$0xff]
    %v180 = vld [vmem:[#allocation5 + $0x388] sm:$0xff]
    %v181 = vld [vmem:[#allocation5 + $0x390] sm:$0xff]
    %v182 = vld [vmem:[#allocation5 + $0x398] sm:$0xff]
    %v183 = vld [vmem:[#allocation5 + $0x3a0] sm:$0xff]
    %v184 = vld [vmem:[#allocation5 + $0x3a8] sm:$0xff]
    %v185 = vld [vmem:[#allocation5 + $0x3b0] sm:$0xff]
    %v186 = vld [vmem:[#allocation5 + $0x3b8] sm:$0xff]
    %v187 = vld [vmem:[#allocation5 + $0x3c0] sm:$0xff]
    %v188 = vld [vmem:[#allocation5 + $0x3c8] sm:$0xff]
    %v189 = vld [vmem:[#allocation5 + $0x3d0] sm:$0xff]
    %v190 = vld [vmem:[#allocation5 + $0x3d8] sm:$0xff]
    %v191 = vld [vmem:[#allocation5 + $0x3e0] sm:$0xff]
    %v192 = vld [vmem:[#allocation5 + $0x3e8] sm:$0xff]
    %v193 = vld [vmem:[#allocation5 + $0x3f0] sm:$0xff]
    %v194 = vld [vmem:[#allocation5 + $0x3f8] sm:$0xff]
    %v195 = vld [vmem:[%s3] sm:$0x1]
    %v196 = vlaneseq
    %v197 = vshrl.u32 %v196, 7
    %v198 = vsub.s32 0, %v197
    %v199 = vrot.slane %v195, %v198
    %v208 = vcombine.low %v59, %v61
    %v209 = vcombine.high %v59, %v61
    %v210 = vcombine.low %v63, %v65
    %v211 = vcombine.high %v63, %v65
    %v213 = vunpack.c.l.s4 1983009808
    %v214 = vunpack.c.0.s8 %v213
    %v215 = vlaneseq
    %v216 = vshrl.u32 %v215, 7
    %v217 = vsub.s32 %v214, %v216
    %v218 = vrot.slane %v208, %v217
    %v220 = vunpack.c.l.s4 1983009808
    %v221 = vunpack.c.0.s8 %v220
    %v222 = vlaneseq
    %v223 = vshrl.u32 %v222, 7
    %v224 = vsub.s32 %v221, %v223
    %v225 = vrot.slane %v209, %v224
    %v227 = vunpack.c.l.s4 1983009808
    %v228 = vunpack.c.0.s8 %v227
    %v229 = vlaneseq
    %v230 = vshrl.u32 %v229, 7
    %v231 = vsub.s32 %v228, %v230
    %v232 = vrot.slane %v210, %v231
    %v234 = vunpack.c.l.s4 1983009808
    %v235 = vunpack.c.0.s8 %v234
    %v236 = vlaneseq
    %v237 = vshrl.u32 %v236, 7
    %v238 = vsub.s32 %v235, %v237
    %v239 = vrot.slane %v211, %v238
    %v240 = vcombine.low %v218, %v232
    %v241 = vcombine.high %v218, %v232
    %v242 = vcombine.low %v225, %v239
    %v243 = vcombine.high %v225, %v239
    %v244 = vcombine.low %v60, %v62
    %v245 = vcombine.high %v60, %v62
    %v246 = vcombine.low %v64, %v66
    %v247 = vcombine.high %v64, %v66
    %v249 = vunpack.c.l.s4 1983009808
    %v250 = vunpack.c.0.s8 %v249
    %v251 = vlaneseq
    %v252 = vshrl.u32 %v251, 7
    %v253 = vsub.s32 %v250, %v252
    %v254 = vrot.slane %v244, %v253
    %v256 = vunpack.c.l.s4 1983009808
    %v257 = vunpack.c.0.s8 %v256
    %v258 = vlaneseq
    %v259 = vshrl.u32 %v258, 7
    %v260 = vsub.s32 %v257, %v259
    %v261 = vrot.slane %v245, %v260
    %v263 = vunpack.c.l.s4 1983009808
    %v264 = vunpack.c.0.s8 %v263
    %v265 = vlaneseq
    %v266 = vshrl.u32 %v265, 7
    %v267 = vsub.s32 %v264, %v266
    %v268 = vrot.slane %v246, %v267
    %v270 = vunpack.c.l.s4 1983009808
    %v271 = vunpack.c.0.s8 %v270
    %v272 = vlaneseq
    %v273 = vshrl.u32 %v272, 7
    %v274 = vsub.s32 %v271, %v273
    %v275 = vrot.slane %v247, %v274
    %v276 = vcombine.low %v254, %v268
    %v277 = vcombine.high %v254, %v268
    %v278 = vcombine.low %v261, %v275
    %v279 = vcombine.high %v261, %v275
    %288 = vmatprep.subr.mxu0 0.0
    %289 = vmatpush1.msra.mxu0 %v67
    %290 = vmatprep.subr.mxu0 0.0
    %291 = vmatpush1.msra.mxu0 %v68
    %292 = vmatprep.subr.mxu0 0.0
    %293 = vmatpush1.msra.mxu0 %v69
    %294 = vmatprep.subr.mxu0 0.0
    %295 = vmatpush1.msra.mxu0 %v70
    %296 = vmatprep.subr.mxu0 0.0
    %297 = vmatpush1.msra.mxu0 %v71
    %298 = vmatprep.subr.mxu0 0.0
    %299 = vmatpush1.msra.mxu0 %v72
    %300 = vmatprep.subr.mxu0 0.0
    %301 = vmatpush1.msra.mxu0 %v73
    %302 = vmatprep.subr.mxu0 0.0
    %303 = vmatpush1.msra.mxu0 %v74
    %304 = vmatprep.subr.mxu0 0.0
    %305 = vmatpush1.msra.mxu0 %v75
    %306 = vmatprep.subr.mxu0 0.0
    %307 = vmatpush1.msra.mxu0 %v76
    %308 = vmatprep.subr.mxu0 0.0
    %309 = vmatpush1.msra.mxu0 %v77
    %310 = vmatprep.subr.mxu0 0.0
    %311 = vmatpush1.msra.mxu0 %v78
    %312 = vmatprep.subr.mxu0 0.0
    %313 = vmatpush1.msra.mxu0 %v79
    %314 = vmatprep.subr.mxu0 0.0
    %315 = vmatpush1.msra.mxu0 %v80
    %316 = vmatprep.subr.mxu0 0.0
    %317 = vmatpush1.msra.mxu0 %v81
    %318 = vmatprep.subr.mxu0 0.0
    %319 = vmatpush1.msra.mxu0 %v82
    %320 = vmatprep.subr.mxu0 0.0
    %321 = vmatpush1.msra.mxu0 %v83
    %322 = vmatprep.subr.mxu0 0.0
    %323 = vmatpush1.msra.mxu0 %v84
    %324 = vmatprep.subr.mxu0 0.0
    %325 = vmatpush1.msra.mxu0 %v85
    %326 = vmatprep.subr.mxu0 0.0
    %327 = vmatpush1.msra.mxu0 %v86
    %328 = vmatprep.subr.mxu0 0.0
    %329 = vmatpush1.msra.mxu0 %v87
    %330 = vmatprep.subr.mxu0 0.0
    %331 = vmatpush1.msra.mxu0 %v88
    %332 = vmatprep.subr.mxu0 0.0
    %333 = vmatpush1.msra.mxu0 %v89
    %334 = vmatprep.subr.mxu0 0.0
    %335 = vmatpush1.msra.mxu0 %v90
    %336 = vmatprep.subr.mxu0 0.0
    %337 = vmatpush1.msra.mxu0 %v91
    %338 = vmatprep.subr.mxu0 0.0
    %339 = vmatpush1.msra.mxu0 %v92
    %340 = vmatprep.subr.mxu0 0.0
    %341 = vmatpush1.msra.mxu0 %v93
    %342 = vmatprep.subr.mxu0 0.0
    %343 = vmatpush1.msra.mxu0 %v94
    %344 = vmatprep.subr.mxu0 0.0
    %345 = vmatpush1.msra.mxu0 %v95
    %346 = vmatprep.subr.mxu0 0.0
    %347 = vmatpush1.msra.mxu0 %v96
    %348 = vmatprep.subr.mxu0 0.0
    %349 = vmatpush1.msra.mxu0 %v97
    %350 = vmatprep.subr.mxu0 0.0
    %351 = vmatpush1.msra.mxu0 %v98
    %352 = vmatprep.mubr.f32.mxu0 %v241
    %353 = vmatmul.mubr.f32.gmra.mrb[0].mxu0 %v240
    %v354 = vpop.f32.mrb[0].mxu0
    %v355 = vadd.f32 %v199, %v354
    %v356 = vpop.f32.mrb[0].mxu0
    %357 = vdwg.mxu0
    %358 = vmatprep.subr.mxu0 0.0
    %359 = vmatpush1.msra.mxu0 %v99
    %360 = vmatprep.subr.mxu0 0.0
    %361 = vmatpush1.msra.mxu0 %v100
    %362 = vmatprep.subr.mxu0 0.0
    %363 = vmatpush1.msra.mxu0 %v101
    %364 = vmatprep.subr.mxu0 0.0
    %365 = vmatpush1.msra.mxu0 %v102
    %366 = vmatprep.subr.mxu0 0.0
    %367 = vmatpush1.msra.mxu0 %v103
    %368 = vmatprep.subr.mxu0 0.0
    %369 = vmatpush1.msra.mxu0 %v104
    %370 = vmatprep.subr.mxu0 0.0
    %371 = vmatpush1.msra.mxu0 %v105
    %372 = vmatprep.subr.mxu0 0.0
    %373 = vmatpush1.msra.mxu0 %v106
    %374 = vmatprep.subr.mxu0 0.0
    %375 = vmatpush1.msra.mxu0 %v107
    %376 = vmatprep.subr.mxu0 0.0
    %377 = vmatpush1.msra.mxu0 %v108
    %378 = vmatprep.subr.mxu0 0.0
    %379 = vmatpush1.msra.mxu0 %v109
    %380 = vmatprep.subr.mxu0 0.0
    %381 = vmatpush1.msra.mxu0 %v110
    %382 = vmatprep.subr.mxu0 0.0
    %383 = vmatpush1.msra.mxu0 %v111
    %384 = vmatprep.subr.mxu0 0.0
    %385 = vmatpush1.msra.mxu0 %v112
    %386 = vmatprep.subr.mxu0 0.0
    %387 = vmatpush1.msra.mxu0 %v113
    %388 = vmatprep.subr.mxu0 0.0
    %389 = vmatpush1.msra.mxu0 %v114
    %390 = vmatprep.subr.mxu0 0.0
    %391 = vmatpush1.msra.mxu0 %v115
    %392 = vmatprep.subr.mxu0 0.0
    %393 = vmatpush1.msra.mxu0 %v116
    %394 = vmatprep.subr.mxu0 0.0
    %395 = vmatpush1.msra.mxu0 %v117
    %396 = vmatprep.subr.mxu0 0.0
    %397 = vmatpush1.msra.mxu0 %v118
    %398 = vmatprep.subr.mxu0 0.0
    %399 = vmatpush1.msra.mxu0 %v119
    %400 = vmatprep.subr.mxu0 0.0
    %401 = vmatpush1.msra.mxu0 %v120
    %402 = vmatprep.subr.mxu0 0.0
    %403 = vmatpush1.msra.mxu0 %v121
    %404 = vmatprep.subr.mxu0 0.0
    %405 = vmatpush1.msra.mxu0 %v122
    %406 = vmatprep.subr.mxu0 0.0
    %407 = vmatpush1.msra.mxu0 %v123
    %408 = vmatprep.subr.mxu0 0.0
    %409 = vmatpush1.msra.mxu0 %v124
    %410 = vmatprep.subr.mxu0 0.0
    %411 = vmatpush1.msra.mxu0 %v125
    %412 = vmatprep.subr.mxu0 0.0
    %413 = vmatpush1.msra.mxu0 %v126
    %414 = vmatprep.subr.mxu0 0.0
    %415 = vmatpush1.msra.mxu0 %v127
    %416 = vmatprep.subr.mxu0 0.0
    %417 = vmatpush1.msra.mxu0 %v128
    %418 = vmatprep.subr.mxu0 0.0
    %419 = vmatpush1.msra.mxu0 %v129
    %420 = vmatprep.subr.mxu0 0.0
    %421 = vmatpush1.msra.mxu0 %v130
    %422 = vmatprep.mubr.f32.mxu0 %v243
    %423 = vmatmul.mubr.f32.gmra.mrb[0].mxu0 %v242
    %v424 = vpop.f32.mrb[0].mxu0
    %v425 = vadd.f32 %v355, %v424
    %v426 = vpop.f32.mrb[0].mxu0
    %427 = vdwg.mxu0
    %428 = vmatprep.subr.mxu0 0.0
    %429 = vmatpush1.msra.mxu0 %v131
    %430 = vmatprep.subr.mxu0 0.0
    %431 = vmatpush1.msra.mxu0 %v132
    %432 = vmatprep.subr.mxu0 0.0
    %433 = vmatpush1.msra.mxu0 %v133
    %434 = vmatprep.subr.mxu0 0.0
    %435 = vmatpush1.msra.mxu0 %v134
    %436 = vmatprep.subr.mxu0 0.0
    %437 = vmatpush1.msra.mxu0 %v135
    %438 = vmatprep.subr.mxu0 0.0
    %439 = vmatpush1.msra.mxu0 %v136
    %440 = vmatprep.subr.mxu0 0.0
    %441 = vmatpush1.msra.mxu0 %v137
    %442 = vmatprep.subr.mxu0 0.0
    %443 = vmatpush1.msra.mxu0 %v138
    %444 = vmatprep.subr.mxu0 0.0
    %445 = vmatpush1.msra.mxu0 %v139
    %446 = vmatprep.subr.mxu0 0.0
    %447 = vmatpush1.msra.mxu0 %v140
    %448 = vmatprep.subr.mxu0 0.0
    %449 = vmatpush1.msra.mxu0 %v141
    %450 = vmatprep.subr.mxu0 0.0
    %451 = vmatpush1.msra.mxu0 %v142
    %452 = vmatprep.subr.mxu0 0.0
    %453 = vmatpush1.msra.mxu0 %v143
    %454 = vmatprep.subr.mxu0 0.0
    %455 = vmatpush1.msra.mxu0 %v144
    %456 = vmatprep.subr.mxu0 0.0
    %457 = vmatpush1.msra.mxu0 %v145
    %458 = vmatprep.subr.mxu0 0.0
    %459 = vmatpush1.msra.mxu0 %v146
    %460 = vmatprep.subr.mxu0 0.0
    %461 = vmatpush1.msra.mxu0 %v147
    %462 = vmatprep.subr.mxu0 0.0
    %463 = vmatpush1.msra.mxu0 %v148
    %464 = vmatprep.subr.mxu0 0.0
    %465 = vmatpush1.msra.mxu0 %v149
    %466 = vmatprep.subr.mxu0 0.0
    %467 = vmatpush1.msra.mxu0 %v150
    %468 = vmatprep.subr.mxu0 0.0
    %469 = vmatpush1.msra.mxu0 %v151
    %470 = vmatprep.subr.mxu0 0.0
    %471 = vmatpush1.msra.mxu0 %v152
    %472 = vmatprep.subr.mxu0 0.0
    %473 = vmatpush1.msra.mxu0 %v153
    %474 = vmatprep.subr.mxu0 0.0
    %475 = vmatpush1.msra.mxu0 %v154
    %476 = vmatprep.subr.mxu0 0.0
    %477 = vmatpush1.msra.mxu0 %v155
    %478 = vmatprep.subr.mxu0 0.0
    %479 = vmatpush1.msra.mxu0 %v156
    %480 = vmatprep.subr.mxu0 0.0
    %481 = vmatpush1.msra.mxu0 %v157
    %482 = vmatprep.subr.mxu0 0.0
    %483 = vmatpush1.msra.mxu0 %v158
    %484 = vmatprep.subr.mxu0 0.0
    %485 = vmatpush1.msra.mxu0 %v159
    %486 = vmatprep.subr.mxu0 0.0
    %487 = vmatpush1.msra.mxu0 %v160
    %488 = vmatprep.subr.mxu0 0.0
    %489 = vmatpush1.msra.mxu0 %v161
    %490 = vmatprep.subr.mxu0 0.0
    %491 = vmatpush1.msra.mxu0 %v162
    %492 = vmatprep.mubr.f32.mxu0 %v277
    %493 = vmatmul.mubr.f32.gmra.mrb[0].mxu0 %v276
    %v494 = vpop.f32.mrb[0].mxu0
    %v495 = vadd.f32 %v425, %v494
    %v496 = vpop.f32.mrb[0].mxu0
    %497 = vdwg.mxu0
    %498 = vmatprep.subr.mxu0 0.0
    %499 = vmatpush1.msra.mxu0 %v163
    %500 = vmatprep.subr.mxu0 0.0
    %501 = vmatpush1.msra.mxu0 %v164
    %502 = vmatprep.subr.mxu0 0.0
    %503 = vmatpush1.msra.mxu0 %v165
    %504 = vmatprep.subr.mxu0 0.0
    %505 = vmatpush1.msra.mxu0 %v166
    %506 = vmatprep.subr.mxu0 0.0
    %507 = vmatpush1.msra.mxu0 %v167
    %508 = vmatprep.subr.mxu0 0.0
    %509 = vmatpush1.msra.mxu0 %v168
    %510 = vmatprep.subr.mxu0 0.0
    %511 = vmatpush1.msra.mxu0 %v169
    %512 = vmatprep.subr.mxu0 0.0
    %513 = vmatpush1.msra.mxu0 %v170
    %514 = vmatprep.subr.mxu0 0.0
    %515 = vmatpush1.msra.mxu0 %v171
    %516 = vmatprep.subr.mxu0 0.0
    %517 = vmatpush1.msra.mxu0 %v172
    %518 = vmatprep.subr.mxu0 0.0
    %519 = vmatpush1.msra.mxu0 %v173
    %520 = vmatprep.subr.mxu0 0.0
    %521 = vmatpush1.msra.mxu0 %v174
    %522 = vmatprep.subr.mxu0 0.0
    %523 = vmatpush1.msra.mxu0 %v175
    %524 = vmatprep.subr.mxu0 0.0
    %525 = vmatpush1.msra.mxu0 %v176
    %526 = vmatprep.subr.mxu0 0.0
    %527 = vmatpush1.msra.mxu0 %v177
    %528 = vmatprep.subr.mxu0 0.0
    %529 = vmatpush1.msra.mxu0 %v178
    %530 = vmatprep.subr.mxu0 0.0
    %531 = vmatpush1.msra.mxu0 %v179
    %532 = vmatprep.subr.mxu0 0.0
    %533 = vmatpush1.msra.mxu0 %v180
    %534 = vmatprep.subr.mxu0 0.0
    %535 = vmatpush1.msra.mxu0 %v181
    %536 = vmatprep.subr.mxu0 0.0
    %537 = vmatpush1.msra.mxu0 %v182
    %538 = vmatprep.subr.mxu0 0.0
    %539 = vmatpush1.msra.mxu0 %v183
    %540 = vmatprep.subr.mxu0 0.0
    %541 = vmatpush1.msra.mxu0 %v184
    %542 = vmatprep.subr.mxu0 0.0
    %543 = vmatpush1.msra.mxu0 %v185
    %544 = vmatprep.subr.mxu0 0.0
    %545 = vmatpush1.msra.mxu0 %v186
    %546 = vmatprep.subr.mxu0 0.0
    %547 = vmatpush1.msra.mxu0 %v187
    %548 = vmatprep.subr.mxu0 0.0
    %549 = vmatpush1.msra.mxu0 %v188
    %550 = vmatprep.subr.mxu0 0.0
    %551 = vmatpush1.msra.mxu0 %v189
    %552 = vmatprep.subr.mxu0 0.0
    %553 = vmatpush1.msra.mxu0 %v190
    %554 = vmatprep.subr.mxu0 0.0
    %555 = vmatpush1.msra.mxu0 %v191
    %556 = vmatprep.subr.mxu0 0.0
    %557 = vmatpush1.msra.mxu0 %v192
    %558 = vmatprep.subr.mxu0 0.0
    %559 = vmatpush1.msra.mxu0 %v193
    %560 = vmatprep.subr.mxu0 0.0
    %561 = vmatpush1.msra.mxu0 %v194
    %562 = vmatprep.mubr.f32.mxu0 %v279
    %563 = vmatmul.mubr.f32.gmra.mrb[0].mxu0 %v278
    %v564 = vpop.f32.mrb[0].mxu0
    %v565 = vadd.f32 %v495, %v564
    %v566 = vpop.f32.mrb[0].mxu0
    %567 = vdwg.mxu0
    %v568 = vmax.f32 %v565, 0.0
    %v569 = vld [vmem:[#allocation7] sm:$0xff]
    %v570 = vld [vmem:[#allocation7 + $0x8] sm:$0xff]
    %v571 = vld [vmem:[#allocation7 + $0x10] sm:$0xff]
    %v572 = vld [vmem:[#allocation7 + $0x18] sm:$0xff]
    %v573 = vld [vmem:[#allocation7 + $0x20] sm:$0xff]
    %v574 = vld [vmem:[#allocation7 + $0x28] sm:$0xff]
    %v575 = vld [vmem:[#allocation7 + $0x30] sm:$0xff]
    %v576 = vld [vmem:[#allocation7 + $0x38] sm:$0xff]
    %v577 = vld [vmem:[#allocation7 + $0x40] sm:$0xff]
    %v578 = vld [vmem:[#allocation7 + $0x48] sm:$0xff]
    %v579 = vld [vmem:[#allocation7 + $0x50] sm:$0xff]
    %v580 = vld [vmem:[#allocation7 + $0x58] sm:$0xff]
    %v581 = vld [vmem:[#allocation7 + $0x60] sm:$0xff]
    %v582 = vld [vmem:[#allocation7 + $0x68] sm:$0xff]
    %v583 = vld [vmem:[#allocation7 + $0x70] sm:$0xff]
    %v584 = vld [vmem:[#allocation7 + $0x78] sm:$0xff]
    %v585 = vld [vmem:[%s3 + $0x1] sm:$0x1]
    %v586 = vlaneseq
    %v587 = vshrl.u32 %v586, 7
    %v588 = vsub.s32 0, %v587
    %v589 = vrot.slane %v585, %v588
    %590 = vmatprep.subr.mxu0 0.0
    %591 = vmatpush1.msra.mxu0 %v569
    %592 = vmatprep.subr.mxu0 0.0
    %593 = vmatpush1.msra.mxu0 %v570
    %594 = vmatprep.subr.mxu0 0.0
    %595 = vmatpush1.msra.mxu0 %v571
    %596 = vmatprep.subr.mxu0 0.0
    %597 = vmatpush1.msra.mxu0 %v572
    %598 = vmatprep.subr.mxu0 0.0
    %599 = vmatpush1.msra.mxu0 %v573
    %600 = vmatprep.subr.mxu0 0.0
    %601 = vmatpush1.msra.mxu0 %v574
    %602 = vmatprep.subr.mxu0 0.0
    %603 = vmatpush1.msra.mxu0 %v575
    %604 = vmatprep.subr.mxu0 0.0
    %605 = vmatpush1.msra.mxu0 %v576
    %606 = vmatprep.subr.mxu0 0.0
    %607 = vmatpush1.msra.mxu0 %v577
    %608 = vmatprep.subr.mxu0 0.0
    %609 = vmatpush1.msra.mxu0 %v578
    %610 = vmatprep.subr.mxu0 0.0
    %611 = vmatpush1.msra.mxu0 %v579
    %612 = vmatprep.subr.mxu0 0.0
    %613 = vmatpush1.msra.mxu0 %v580
    %614 = vmatprep.subr.mxu0 0.0
    %615 = vmatpush1.msra.mxu0 %v581
    %616 = vmatprep.subr.mxu0 0.0
    %617 = vmatpush1.msra.mxu0 %v582
    %618 = vmatprep.subr.mxu0 0.0
    %619 = vmatpush1.msra.mxu0 %v583
    %620 = vmatprep.subr.mxu0 0.0
    %621 = vmatpush1.msra.mxu0 %v584
    %622 = vmatprep.subr.mxu0 0.0
    %623 = vmatpush1.msra.mxu0 0.0
    %624 = vmatprep.subr.mxu0 0.0
    %625 = vmatpush1.msra.mxu0 0.0
    %626 = vmatprep.subr.mxu0 0.0
    %627 = vmatpush1.msra.mxu0 0.0
    %628 = vmatprep.subr.mxu0 0.0
    %629 = vmatpush1.msra.mxu0 0.0
    %630 = vmatprep.subr.mxu0 0.0
    %631 = vmatpush1.msra.mxu0 0.0
    %632 = vmatprep.subr.mxu0 0.0
    %633 = vmatpush1.msra.mxu0 0.0
    %634 = vmatprep.subr.mxu0 0.0
    %635 = vmatpush1.msra.mxu0 0.0
    %636 = vmatprep.subr.mxu0 0.0
    %637 = vmatpush1.msra.mxu0 0.0
    %638 = vmatprep.subr.mxu0 0.0
    %639 = vmatpush1.msra.mxu0 0.0
    %640 = vmatprep.subr.mxu0 0.0
    %641 = vmatpush1.msra.mxu0 0.0
    %642 = vmatprep.subr.mxu0 0.0
    %643 = vmatpush1.msra.mxu0 0.0
    %644 = vmatprep.subr.mxu0 0.0
    %645 = vmatpush1.msra.mxu0 0.0
    %646 = vmatprep.subr.mxu0 0.0
    %647 = vmatpush1.msra.mxu0 0.0
    %648 = vmatprep.subr.mxu0 0.0
    %649 = vmatpush1.msra.mxu0 0.0
    %650 = vmatprep.subr.mxu0 0.0
    %651 = vmatpush1.msra.mxu0 0.0
    %652 = vmatprep.subr.mxu0 0.0
    %653 = vmatpush1.msra.mxu0 0.0
    %654 = vmatprep.mubr.f32.mxu0 0.0
    %655 = vmatmul.mubr.f32.gmra.mrb[0].mxu0 %v568
    %v656 = vpop.f32.mrb[0].mxu0
    %v657 = vadd.f32 %v589, %v656
    %v658 = vpop.f32.mrb[0].mxu0
    %659 = vdwg.mxu0
    %v660 = vmax.f32 %v657, 0.0
    %661 = vst [vmem:[#allocation8] sm:$0xff] %v660
    // Predicated region
    $region30: #{tpu_custom_call.1} parent=1 // pred_check
      _
    $region31: #{tpu_custom_call.1} parent=1 // pred_check_branch
      %663 = sbr.rel (0) target = $region33
    $region32: #{tpu_custom_call.1} parent=1 // pred_region
      %s665 = ssub.s32 128, 32
      %666 = vsyncadd [#allocation4], %s665
      %s667 = sshll.u32 [#allocation8], 4
      %s668 = int_to_ptr.vmem [resolvable:$true] %s667
      %673 = dma.vmem_to_hbm [thread:$0]  %s668, 32, %s4, [#allocation4], 32, 32, 2
    $region33: #{tpu_custom_call.1} parent=1 // pred_fallthru
      _
    // Predicated region
    $region34: #{tpu_custom_call.1} parent=1 // pred_check
      _
    $region35: #{tpu_custom_call.1} parent=1 // pred_check_branch
      %675 = sbr.rel (0) target = $region37
    $region36: #{tpu_custom_call.1} parent=1 // pred_region
      %676 = dma.done [#allocation4], 128
    $region37: #{tpu_custom_call.1} parent=1 // pred_fallthru
      _
    %677 = vsyncpa [#allocation3], 1
    %678 = vsyncpa [#allocation6], 1
    %679 = vsyncpa [#allocation4], 1

</llo_original>
